<compile_context>
chip_gen: v7x
topology: tpu7x:2x2x1
jax: 0.10.0
libtpu: 0.0.40
codegen_flags: <defaults>
</compile_context>

<pallas_src>
import functools

import jax
import jax.numpy as jnp
from jax import lax
from jax.experimental import pallas as pl
from jax.experimental.pallas import tpu as pltpu


# ---------------------------------------------------------------------------
# Fused kernel: distances, argmin, one-hot gather, occupancy counts, loss
# partial sum, and (on the first inner step) codebook self-distance stats.
# ---------------------------------------------------------------------------
def _vq_kernel(z_ref, e_ref, zq_ref, idx_ref, cnt_ref, loss_ref, dist_ref,
               var_ref, *, n_inner, m_valid, padded):
    n_e, D = e_ref.shape
    tm = z_ref.shape[0]
    inner = pl.program_id(1)

    e = e_ref[...]                                                   # (n_e, D)
    ee = e * e
    # ||e_c||^2 laid out along lanes: ones(1,D) . (E*E)^T   (MXU, NT matmul)
    ones_d = jnp.ones((1, D), jnp.float32)
    e_sq_row = lax.dot_general(ones_d, ee, (((1,), (1,)), ((), ())),
                               preferred_element_type=jnp.float32)   # (1, n_e)

    # --- first inner step: init resident accumulators + codebook statistics
    @pl.when(inner == 0)
    def _():
        cnt_ref[...] = jnp.zeros_like(cnt_ref)
        loss_ref[...] = jnp.zeros_like(loss_ref)

        e_sq_col = jnp.sum(ee, axis=1, keepdims=True)                # (n_e, 1)
        g_ee = lax.dot_general(e, e, (((1,), (1,)), ((), ())),
                               preferred_element_type=jnp.float32)   # (n_e, n_e)
        cd = e_sq_col + e_sq_row - 2.0 * g_ee

        # mean of 2nd smallest per column == torch.kthvalue(cd, 2, dim=0).mean()
        m1 = jnp.min(cd, axis=0, keepdims=True)                      # (1, n_e)
        rowi = lax.broadcasted_iota(jnp.int32, cd.shape, 0)
        first = jnp.min(jnp.where(cd == m1, rowi, n_e), axis=0, keepdims=True)
        big = jnp.float32(3.0e38)
        m2 = jnp.min(jnp.where(rowi == first, big, cd), axis=0, keepdims=True)
        dist_ref[...] = jnp.mean(m2, axis=1, keepdims=True).reshape(1, 1, 1)

        # mean over rows of unbiased per-row variance == torch.var(cd, 1).mean()
        mu = jnp.mean(cd, axis=1, keepdims=True)
        ctr = cd - mu
        var_rows = jnp.sum(ctr * ctr, axis=1, keepdims=True) / jnp.float32(n_e - 1)
        var_ref[...] = jnp.mean(var_rows, axis=0, keepdims=True).reshape(1, 1, 1)

    # --- main quantisation path (every grid step)
    z = z_ref[...]                                                   # (tm, D)
    g = lax.dot_general(z, e, (((1,), (1,)), ((), ())),
                        preferred_element_type=jnp.float32)          # (tm, n_e)
    # ||z||^2 is constant per row -> does not affect the argmin; drop it.
    s = e_sq_row - 2.0 * g                                           # (tm, n_e)

    col = lax.broadcasted_iota(jnp.int32, s.shape, 1)
    s_min = jnp.min(s, axis=1, keepdims=True)                        # (tm, 1)
    # first-occurrence tie-break, like torch.argmin
    idx_col = jnp.min(jnp.where(s == s_min, col, n_e), axis=1, keepdims=True)
    one_hot = (col == idx_col).astype(jnp.float32)                   # (tm, n_e)

    z_q = jnp.dot(one_hot, e, preferred_element_type=jnp.float32)    # (tm, D)
    zq_ref[...] = z_q

    # lane-dense index row via MXU: iota_row . one_hot^T  (exact for 0/1 one-hot)
    iota_row = lax.broadcasted_iota(jnp.int32, (1, n_e), 1).astype(jnp.float32)
    idx_row = lax.dot_general(iota_row, one_hot, (((1,), (1,)), ((), ())),
                              preferred_element_type=jnp.float32)    # (1, tm)
    idx_ref[...] = idx_row.astype(jnp.int32).reshape(1, 1, tm)

    # validity mask for zero-padded remainder rows (static no-op when not padded)
    if padded:
        blk = pl.program_id(0) * n_inner + inner
        row0 = blk * tm
        sub_pos = lax.broadcasted_iota(jnp.int32, (tm, 1), 0) + row0
        valid_col = sub_pos < m_valid                                # (tm, 1)
        oh_eff = jnp.where(valid_col, one_hot, 0.0)
    else:
        valid_col = None
        oh_eff = one_hot

    # per-code selection counts, lane-dense (1, n_e), resident accumulator
    counts = jnp.sum(oh_eff, axis=0, keepdims=True)                  # (1, n_e)
    cnt_ref[...] += counts.reshape(1, 1, n_e)

    # commitment-loss partial sum (exact ||z_q - z||^2 for parity with torch)
    diff = z_q - z
    sq = diff * diff
    if padded:
        sq = jnp.where(valid_col, sq, 0.0)
    part = jnp.sum(sq, axis=1, keepdims=True)                        # (tm, 1)
    loss_ref[...] += jnp.sum(part, axis=0, keepdims=True).reshape(1, 1, 1)


# ---------------------------------------------------------------------------
# Wrapper: tiling / padding / megacore split + pallas_call
# ---------------------------------------------------------------------------
def _row_tile(M):
    # Single big block up to 1024 rows (per-step overhead dominates at these
    # sizes); beyond that, fixed 1024-row tiles with zero-padded remainder so
    # the (tm, n_e) temporaries stay ~O(5 MiB) << VMEM on all generations.
    if M <= 1024:
        return M, M
    tm = 1024
    m_pad = ((M + tm - 1) // tm) * tm
    return tm, m_pad


def _vq_quantize(z_flat, emb):
    M, D = z_flat.shape
    n_e = emb.shape[0]
    tm, m_pad = _row_tile(M)
    num_blocks = m_pad // tm
    padded = m_pad != M

    z_in = z_flat
    if padded:
        z_in = jnp.concatenate(
            [z_flat, jnp.zeros((m_pad - M, D), z_flat.dtype)], axis=0)

    # leading "parallel" super-block axis (2 TensorCores on v7x); inner axis
    # carries the resident accumulators and stays "arbitrary".
    n_outer = 2 if (num_blocks >= 2 and num_blocks % 2 == 0) else 1
    n_inner = num_blocks // n_outer

    kernel = functools.partial(_vq_kernel, n_inner=n_inner, m_valid=M,
                               padded=padded)

    out_shapes = (
        jax.ShapeDtypeStruct((m_pad, D), jnp.float32),          # z_q
        jax.ShapeDtypeStruct((num_blocks, 1, tm), jnp.int32),   # indices (rows)
        jax.ShapeDtypeStruct((n_outer, 1, n_e), jnp.float32),   # code counts
        jax.ShapeDtypeStruct((n_outer, 1, 1), jnp.float32),     # sum ||zq - z||^2
        jax.ShapeDtypeStruct((n_outer, 1, 1), jnp.float32),     # mean cb distance
        jax.ShapeDtypeStruct((n_outer, 1, 1), jnp.float32),     # mean cb variance
    )
    in_specs = [
        pl.BlockSpec((tm, D), lambda o, i: (o * n_inner + i, 0)),
        pl.BlockSpec((n_e, D), lambda o, i: (0, 0)),
    ]
    out_specs = (
        pl.BlockSpec((tm, D), lambda o, i: (o * n_inner + i, 0)),
        pl.BlockSpec((1, 1, tm), lambda o, i: (o * n_inner + i, 0, 0)),
        pl.BlockSpec((1, 1, n_e), lambda o, i: (o, 0, 0)),      # per-outer resident
        pl.BlockSpec((1, 1, 1), lambda o, i: (o, 0, 0)),        # per-outer resident
        pl.BlockSpec((1, 1, 1), lambda o, i: (o, 0, 0)),
        pl.BlockSpec((1, 1, 1), lambda o, i: (o, 0, 0)),
    )

    zq_pad, idx_blocks, counts, loss_parts, dists, vars_ = pl.pallas_call(
        kernel,
        out_shape=out_shapes,
        grid=(n_outer, n_inner),
        in_specs=in_specs,
        out_specs=out_specs,
        compiler_params=pltpu.CompilerParams(
            dimension_semantics=("parallel", "arbitrary"),
            vmem_limit_bytes=32 * 1024 * 1024),
    )(z_in, emb)

    z_q = zq_pad[:M]
    min_encoding_indices = idx_blocks.reshape(-1)[:M]
    total_counts = jnp.sum(counts.reshape(n_outer, n_e), axis=0)
    occ = (total_counts > 0).astype(jnp.float32)                 # (n_e,)
    loss_sum = jnp.sum(loss_parts)
    mean_cb_distance = dists.reshape(-1)[0]
    mean_cb_variance = vars_.reshape(-1)[0]
    return (z_q, min_encoding_indices, occ, loss_sum,
            mean_cb_distance, mean_cb_variance)


# ---------------------------------------------------------------------------
# GeometricVQ forward (prev_cb=None path, quantise='feature')
# ---------------------------------------------------------------------------
def geometric_vq_forward(z, embedding, *, beta=0.9, legacy=True,
                         quantise="feature"):
    # TODO(synk): the prev_cb hyperbolic branch (expmap0 / HNNLayer / logmap0 /
    # Poincare distance) and the quantise='spatial' rearrange are not
    # implemented; only the default forward (prev_cb=None, 'feature') is.
    if quantise != "feature":
        raise NotImplementedError("only quantise='feature' is implemented")

    z = z.astype(jnp.float32)
    embedding = embedding.astype(jnp.float32)
    B, T = z.shape[0], z.shape[1]
    n_e, e_dim = embedding.shape
    z_flat = z.reshape(-1, e_dim)

    (z_q_flat, min_encoding_indices, occ, loss_sum,
     mean_cb_distance, mean_cb_variance) = _vq_quantize(z_flat, embedding)

    z_q = z_q_flat.reshape(z.shape)

    # zn = F.normalize(z_q)  (default p=2, dim=1 -> middle axis of (B, T, D))
    norm1 = jnp.sqrt(jnp.sum(z_q * z_q, axis=1, keepdims=True))
    zn = z_q / jnp.maximum(norm1, 1e-12)

    # loss forward value: mean((zq-z)^2) + beta*mean((zq-z)^2) (legacy or not)
    mse = loss_sum / jnp.float32(z.size)
    loss = (1.0 + beta) * mse

    # TODO(synk): straight-through estimator z + (z_q - z).detach() and the
    # detach placement in the two loss terms need jax.custom_vjp; the forward
    # value is exactly z_q, which is what we return.
    z_q_st = z_q

    # sampled_idx: torch scatters indices in [0, n_e) into a flat (B*n_e,)
    # buffer, so only row 0 of the (B, n_e) view is ever populated.
    occ_row = occ.reshape(1, n_e)
    if B > 1:
        sampled_idx = jnp.concatenate(
            [occ_row, jnp.zeros((B - 1, n_e), jnp.float32)], axis=0)
    else:
        sampled_idx = occ_row

    si = min_encoding_indices.reshape(B, T)
    min_idx_view = min_encoding_indices.reshape(B, -1)

    prevcb = None
    attention_w = None
    cb_attn = None
    return (z_q_st, loss, (sampled_idx, min_idx_view), mean_cb_variance,
            mean_cb_distance, prevcb, attention_w, cb_attn, si, zn)


# ---------------------------------------------------------------------------
# Parameter init: uniform points on the unit hypersphere S^(e_dim-1)
# ---------------------------------------------------------------------------
def init_codebook(key, n_e=128, e_dim=16):
    w = jax.random.normal(key, (n_e, e_dim), jnp.float32)
    return w / jnp.linalg.norm(w, axis=1, keepdims=True)


# ---------------------------------------------------------------------------
if __name__ == "__main__":
    key = jax.random.PRNGKey(0)
    k_emb, k_z = jax.random.split(key)

    n_e, e_dim = 128, 16
    B, T = 2, 8

    emb = init_codebook(k_emb, n_e, e_dim)
    z = jax.random.normal(k_z, (B, T, e_dim), dtype=jnp.float32)

    fwd = jax.jit(lambda zz, ee: geometric_vq_forward(zz, ee, beta=0.9,
                                                      legacy=True))
    outs = jax.block_until_ready(fwd(z, emb))
    (z_q, loss, (sampled_idx, min_idx), mean_cb_var, mean_cb_dist,
     _prevcb, _attn, _cb_attn, si, zn) = outs

    assert z_q.shape == (B, T, e_dim), z_q.shape
    assert zn.shape == (B, T, e_dim), zn.shape
    assert si.shape == (B, T), si.shape
    assert min_idx.shape == (B, T), min_idx.shape
    assert sampled_idx.shape == (B, n_e), sampled_idx.shape

    assert bool(jnp.all(jnp.isfinite(z_q)))
    assert bool(jnp.all(jnp.isfinite(zn)))
    assert bool(jnp.isfinite(loss)) and float(loss) >= 0.0
    assert bool(jnp.all(min_idx >= 0)) and bool(jnp.all(min_idx < n_e))

    # each quantised row must (numerically) be the codebook row it indexes
    gathered = emb[min_idx.reshape(-1)]
    assert bool(jnp.allclose(z_q.reshape(-1, e_dim), gathered, atol=1e-5))

    # occupancy row 0 marks exactly the selected codes; other rows are zero
    assert float(jnp.sum(sampled_idx)) >= 1.0
    assert float(jnp.sum(sampled_idx[1:])) == 0.0

    assert float(mean_cb_dist) > 0.0 and bool(jnp.isfinite(mean_cb_var))

    print("KERNEL_OK")
</pallas_src>

<mosaic_0001>
module attributes {stable_mosaic.version = 11 : i64} {
  func.func @_vq_kernel(%arg0: i32, %arg1: i32, %arg2: memref<16x16xf32, #tpu.memory_space<vmem>>, %arg3: memref<128x16xf32, #tpu.memory_space<vmem>>, %arg4: memref<16x16xf32, #tpu.memory_space<vmem>>, %arg5: memref<1x1x16xi32, #tpu.memory_space<vmem>>, %arg6: memref<1x1x128xf32, #tpu.memory_space<vmem>>, %arg7: memref<1x1x1xf32, #tpu.memory_space<vmem>>, %arg8: memref<1x1x1xf32, #tpu.memory_space<vmem>>, %arg9: memref<1x1x1xf32, #tpu.memory_space<vmem>>) attributes {dimension_semantics = [#tpu.dimension_semantics<parallel>, #tpu.dimension_semantics<arbitrary>], iteration_bounds = array<i64: 1, 1>, scalar_prefetch = 0 : i64, scratch_operands = 0 : i64, tpu.core_type = #tpu.core_type<tc>, window_params = [{transform_indices = @transform_0, window_bounds = array<i64: 16, 16>}, {pipeline_mode = #tpu.pipeline_mode<synchronous>, transform_indices = @transform_1, window_bounds = array<i64: 128, 16>}, {transform_indices = @transform_2, window_bounds = array<i64: 16, 16>}, {transform_indices = @transform_3, window_bounds = array<i64: 1, 1, 16>}, {transform_indices = @transform_4, window_bounds = array<i64: 1, 1, 128>}, {transform_indices = @transform_5, window_bounds = array<i64: 1, 1, 1>}, {transform_indices = @transform_6, window_bounds = array<i64: 1, 1, 1>}, {transform_indices = @transform_7, window_bounds = array<i64: 1, 1, 1>}]} {
    %c0 = arith.constant 0 : index
    %c0_0 = arith.constant 0 : index
    %0 = vector.load %arg3[%c0, %c0_0] : memref<128x16xf32, #tpu.memory_space<vmem>>, vector<128x16xf32>
    %1 = arith.mulf %0, %0 : vector<128x16xf32>
    %cst = arith.constant 1.000000e+00 : f32
    %2 = vector.broadcast %cst : f32 to vector<1x16xf32>
    %cst_1 = arith.constant dense<0.000000e+00> : vector<1x128xf32>
    %3 = tpu.matmul %2, %1, %cst_1 {dimension_numbers = #tpu.dot_dimension_numbers<[1], [1], [0], [0], [0, 0, 1, 0], [], []>} : vector<1x16xf32>, vector<128x16xf32>, vector<1x128xf32> -> vector<1x128xf32>
    %c0_i32 = arith.constant 0 : i32
    %4 = arith.cmpi eq, %arg1, %c0_i32 : i32
    %5 = arith.extui %4 : i1 to i32
    %c0_i32_2 = arith.constant 0 : i32
    %6 = arith.cmpi ne, %5, %c0_i32_2 : i32
    scf.if %6 {
      %cst_31 = arith.constant 0.000000e+00 : f32
      %50 = vector.broadcast %cst_31 : f32 to vector<1x1x128xf32>
      %c0_32 = arith.constant 0 : index
      %c0_33 = arith.constant 0 : index
      %c0_34 = arith.constant 0 : index
      %51 = vector.load %arg6[%c0_32, %c0_33, %c0_34] : memref<1x1x128xf32, #tpu.memory_space<vmem>>, vector<1x1x128xf32>
      tpu.vector_store %arg6[%c0_32, %c0_33, %c0_34], %50 {strides = array<i32>} : memref<1x1x128xf32, #tpu.memory_space<vmem>>, vector<1x1x128xf32>,
      %cst_35 = arith.constant 0.000000e+00 : f32
      %52 = vector.broadcast %cst_35 : f32 to vector<1x1x1xf32>
      %c0_36 = arith.constant 0 : index
      %c0_37 = arith.constant 0 : index
      %c0_38 = arith.constant 0 : index
      %53 = vector.load %arg7[%c0_36, %c0_37, %c0_38] : memref<1x1x1xf32, #tpu.memory_space<vmem>>, vector<1x1x1xf32>
      tpu.vector_store %arg7[%c0_36, %c0_37, %c0_38], %52 {strides = array<i32>} : memref<1x1x1xf32, #tpu.memory_space<vmem>>, vector<1x1x1xf32>,
      %cst_39 = arith.constant dense<0.000000e+00> : vector<128xf32>
      %54 = vector.multi_reduction <add>, %1, %cst_39 [1] : vector<128x16xf32> to vector<128xf32>
      %55 = vector.shape_cast %54 : vector<128xf32> to vector<128x1xf32>
      %cst_40 = arith.constant dense<0.000000e+00> : vector<128x128xf32>
      %56 = tpu.matmul %0, %0, %cst_40 {dimension_numbers = #tpu.dot_dimension_numbers<[1], [1], [0], [0], [0, 0, 1, 0], [], []>} : vector<128x16xf32>, vector<128x16xf32>, vector<128x128xf32> -> vector<128x128xf32>
      %57 = vector.broadcast %55 : vector<128x1xf32> to vector<128x128xf32>
      %58 = vector.broadcast %3 : vector<1x128xf32> to vector<128x128xf32>
      %59 = arith.addf %57, %58 : vector<128x128xf32>
      %cst_41 = arith.constant 2.000000e+00 : f32
      %60 = vector.broadcast %cst_41 : f32 to vector<128x128xf32>
      %61 = arith.mulf %60, %56 : vector<128x128xf32>
      %62 = arith.subf %59, %61 : vector<128x128xf32>
      %cst_42 = arith.constant dense<0x7F800000> : vector<128xf32>
      %63 = vector.multi_reduction <minimumf>, %62, %cst_42 [0] : vector<128x128xf32> to vector<128xf32>
      %64 = vector.shape_cast %63 : vector<128xf32> to vector<1x128xf32>
      %65 = tpu.iota {dimensions = array<i32: 0>} : vector<128x128xi32>
      %66 = vector.broadcast %64 : vector<1x128xf32> to vector<128x128xf32>
      %67 = arith.cmpf oeq, %62, %66 : vector<128x128xf32>
      %c128_i32_43 = arith.constant 128 : i32
      %68 = vector.broadcast %c128_i32_43 : i32 to vector<128x128xi32>
      %69 = arith.select %67, %65, %68 : vector<128x128xi1>, vector<128x128xi32>
      %cst_44 = arith.constant dense<2147483647> : vector<128xi32>
      %70 = vector.multi_reduction <minsi>, %69, %cst_44 [0] : vector<128x128xi32> to vector<128xi32>
      %71 = vector.shape_cast %70 : vector<128xi32> to vector<1x128xi32>
      %72 = vector.broadcast %71 : vector<1x128xi32> to vector<128x128xi32>
      %73 = arith.cmpi eq, %65, %72 : vector<128x128xi32>
      %cst_45 = arith.constant 3.000000e+38 : f32
      %74 = vector.broadcast %cst_45 : f32 to vector<128x128xf32>
      %75 = arith.select %73, %74, %62 : vector<128x128xi1>, vector<128x128xf32>
      %cst_46 = arith.constant dense<0x7F800000> : vector<128xf32>
      %76 = vector.multi_reduction <minimumf>, %75, %cst_46 [0] : vector<128x128xf32> to vector<128xf32>
      %77 = vector.shape_cast %76 : vector<128xf32> to vector<1x128xf32>
      %cst_47 = arith.constant dense<0.000000e+00> : vector<1xf32>
      %78 = vector.multi_reduction <add>, %77, %cst_47 [1] : vector<1x128xf32> to vector<1xf32>
      %79 = vector.shape_cast %78 : vector<1xf32> to vector<1x1xf32>
      %cst_48 = arith.constant 1.280000e+02 : f32
      %80 = vector.broadcast %cst_48 : f32 to vector<1x1xf32>
      %81 = arith.divf %79, %80 : vector<1x1xf32>
      %82 = vector.shape_cast %81 : vector<1x1xf32> to vector<1x1x1xf32>
      %c0_49 = arith.constant 0 : index
      %c0_50 = arith.constant 0 : index
      %c0_51 = arith.constant 0 : index
      %83 = vector.load %arg8[%c0_49, %c0_50, %c0_51] : memref<1x1x1xf32, #tpu.memory_space<vmem>>, vector<1x1x1xf32>
      tpu.vector_store %arg8[%c0_49, %c0_50, %c0_51], %82 {strides = array<i32>} : memref<1x1x1xf32, #tpu.memory_space<vmem>>, vector<1x1x1xf32>,
      %cst_52 = arith.constant dense<0.000000e+00> : vector<128xf32>
      %84 = vector.multi_reduction <add>, %62, %cst_52 [1] : vector<128x128xf32> to vector<128xf32>
      %85 = vector.shape_cast %84 : vector<128xf32> to vector<128x1xf32>
      %cst_53 = arith.constant 1.280000e+02 : f32
      %86 = vector.broadcast %cst_53 : f32 to vector<128x1xf32>
      %87 = arith.divf %85, %86 : vector<128x1xf32>
      %88 = vector.broadcast %87 : vector<128x1xf32> to vector<128x128xf32>
      %89 = arith.subf %62, %88 : vector<128x128xf32>
      %90 = arith.mulf %89, %89 : vector<128x128xf32>
      %cst_54 = arith.constant dense<0.000000e+00> : vector<128xf32>
      %91 = vector.multi_reduction <add>, %90, %cst_54 [1] : vector<128x128xf32> to vector<128xf32>
      %92 = vector.shape_cast %91 : vector<128xf32> to vector<128x1xf32>
      %cst_55 = arith.constant 1.270000e+02 : f32
      %93 = vector.broadcast %cst_55 : f32 to vector<128x1xf32>
      %94 = arith.divf %92, %93 : vector<128x1xf32>
      %cst_56 = arith.constant dense<0.000000e+00> : vector<1xf32>
      %95 = vector.multi_reduction <add>, %94, %cst_56 [0] : vector<128x1xf32> to vector<1xf32>
      %96 = vector.shape_cast %95 : vector<1xf32> to vector<1x1xf32>
      %cst_57 = arith.constant 1.280000e+02 : f32
      %97 = vector.broadcast %cst_57 : f32 to vector<1x1xf32>
      %98 = arith.divf %96, %97 : vector<1x1xf32>
      %99 = vector.shape_cast %98 : vector<1x1xf32> to vector<1x1x1xf32>
      %c0_58 = arith.constant 0 : index
      %c0_59 = arith.constant 0 : index
      %c0_60 = arith.constant 0 : index
      %100 = vector.load %arg9[%c0_58, %c0_59, %c0_60] : memref<1x1x1xf32, #tpu.memory_space<vmem>>, vector<1x1x1xf32>
      tpu.vector_store %arg9[%c0_58, %c0_59, %c0_60], %99 {strides = array<i32>} : memref<1x1x1xf32, #tpu.memory_space<vmem>>, vector<1x1x1xf32>,
    } else {
    }
    %c0_3 = arith.constant 0 : index
    %c0_4 = arith.constant 0 : index
    %7 = vector.load %arg2[%c0_3, %c0_4] : memref<16x16xf32, #tpu.memory_space<vmem>>, vector<16x16xf32>
    %cst_5 = arith.constant dense<0.000000e+00> : vector<16x128xf32>
    %8 = tpu.matmul %7, %0, %cst_5 {dimension_numbers = #tpu.dot_dimension_numbers<[1], [1], [0], [0], [0, 0, 1, 0], [], []>} : vector<16x16xf32>, vector<128x16xf32>, vector<16x128xf32> -> vector<16x128xf32>
    %cst_6 = arith.constant 2.000000e+00 : f32
    %9 = vector.broadcast %cst_6 : f32 to vector<16x128xf32>
    %10 = arith.mulf %9, %8 : vector<16x128xf32>
    %11 = vector.broadcast %3 : vector<1x128xf32> to vector<16x128xf32>
    %12 = arith.subf %11, %10 : vector<16x128xf32>
    %13 = tpu.iota {dimensions = array<i32: 1>} : vector<16x128xi32>
    %cst_7 = arith.constant dense<0x7F800000> : vector<16xf32>
    %14 = vector.multi_reduction <minimumf>, %12, %cst_7 [1] : vector<16x128xf32> to vector<16xf32>
    %15 = vector.shape_cast %14 : vector<16xf32> to vector<16x1xf32>
    %16 = vector.broadcast %15 : vector<16x1xf32> to vector<16x128xf32>
    %17 = arith.cmpf oeq, %12, %16 : vector<16x128xf32>
    %c128_i32 = arith.constant 128 : i32
    %18 = vector.broadcast %c128_i32 : i32 to vector<16x128xi32>
    %19 = arith.select %17, %13, %18 : vector<16x128xi1>, vector<16x128xi32>
    %cst_8 = arith.constant dense<2147483647> : vector<16xi32>
    %20 = vector.multi_reduction <minsi>, %19, %cst_8 [1] : vector<16x128xi32> to vector<16xi32>
    %21 = vector.shape_cast %20 : vector<16xi32> to vector<16x1xi32>
    %22 = vector.broadcast %21 : vector<16x1xi32> to vector<16x128xi32>
    %23 = arith.cmpi eq, %13, %22 : vector<16x128xi32>
    %24 = arith.extui %23 : vector<16x128xi1> to vector<16x128xi32>
    %25 = arith.sitofp %24 : vector<16x128xi32> to vector<16x128xf32>
    %cst_9 = arith.constant dense<0.000000e+00> : vector<16x16xf32>
    %26 = tpu.matmul %25, %0, %cst_9 {dimension_numbers = #tpu.dot_dimension_numbers<[1], [0], [0], [1], [0, 0, 1, 1], [], []>} : vector<16x128xf32>, vector<128x16xf32>, vector<16x16xf32> -> vector<16x16xf32>
    %c0_10 = arith.constant 0 : index
    %c0_11 = arith.constant 0 : index
    %27 = vector.load %arg4[%c0_10, %c0_11] : memref<16x16xf32, #tpu.memory_space<vmem>>, vector<16x16xf32>
    tpu.vector_store %arg4[%c0_10, %c0_11], %26 {strides = array<i32>} : memref<16x16xf32, #tpu.memory_space<vmem>>, vector<16x16xf32>,
    %28 = tpu.iota {dimensions = array<i32: 1>} : vector<1x128xi32>
    %29 = arith.sitofp %28 : vector<1x128xi32> to vector<1x128xf32>
    %cst_12 = arith.constant dense<0.000000e+00> : vector<1x16xf32>
    %30 = tpu.matmul %29, %25, %cst_12 {dimension_numbers = #tpu.dot_dimension_numbers<[1], [1], [0], [0], [0, 0, 1, 0], [], []>} : vector<1x128xf32>, vector<16x128xf32>, vector<1x16xf32> -> vector<1x16xf32>
    %31 = arith.fptosi %30 : vector<1x16xf32> to vector<1x16xi32>
    %32 = vector.shape_cast %31 : vector<1x16xi32> to vector<1x1x16xi32>
    %c0_13 = arith.constant 0 : index
    %c0_14 = arith.constant 0 : index
    %c0_15 = arith.constant 0 : index
    %33 = vector.load %arg5[%c0_13, %c0_14, %c0_15] : memref<1x1x16xi32, #tpu.memory_space<vmem>>, vector<1x1x16xi32>
    tpu.vector_store %arg5[%c0_13, %c0_14, %c0_15], %32 {strides = array<i32>} : memref<1x1x16xi32, #tpu.memory_space<vmem>>, vector<1x1x16xi32>,
    %cst_16 = arith.constant dense<0.000000e+00> : vector<128xf32>
    %34 = vector.multi_reduction <add>, %25, %cst_16 [0] : vector<16x128xf32> to vector<128xf32>
    %35 = vector.shape_cast %34 : vector<128xf32> to vector<1x128xf32>
    %c0_17 = arith.constant 0 : index
    %c0_18 = arith.constant 0 : index
    %c0_19 = arith.constant 0 : index
    %36 = vector.load %arg6[%c0_17, %c0_18, %c0_19] : memref<1x1x128xf32, #tpu.memory_space<vmem>>, vector<1x1x128xf32>
    %37 = vector.shape_cast %35 : vector<1x128xf32> to vector<1x1x128xf32>
    %38 = arith.addf %36, %37 : vector<1x1x128xf32>
    %c0_20 = arith.constant 0 : index
    %c0_21 = arith.constant 0 : index
    %c0_22 = arith.constant 0 : index
    %39 = vector.load %arg6[%c0_20, %c0_21, %c0_22] : memref<1x1x128xf32, #tpu.memory_space<vmem>>, vector<1x1x128xf32>
    tpu.vector_store %arg6[%c0_20, %c0_21, %c0_22], %38 {strides = array<i32>} : memref<1x1x128xf32, #tpu.memory_space<vmem>>, vector<1x1x128xf32>,
    %40 = arith.subf %26, %7 : vector<16x16xf32>
    %41 = arith.mulf %40, %40 : vector<16x16xf32>
    %cst_23 = arith.constant dense<0.000000e+00> : vector<16xf32>
    %42 = vector.multi_reduction <add>, %41, %cst_23 [1] : vector<16x16xf32> to vector<16xf32>
    %43 = vector.shape_cast %42 : vector<16xf32> to vector<16x1xf32>
    %c0_24 = arith.constant 0 : index
    %c0_25 = arith.constant 0 : index
    %c0_26 = arith.constant 0 : index
    %44 = vector.load %arg7[%c0_24, %c0_25, %c0_26] : memref<1x1x1xf32, #tpu.memory_space<vmem>>, vector<1x1x1xf32>
    %cst_27 = arith.constant dense<0.000000e+00> : vector<1xf32>
    %45 = vector.multi_reduction <add>, %43, %cst_27 [0] : vector<16x1xf32> to vector<1xf32>
    %46 = vector.shape_cast %45 : vector<1xf32> to vector<1x1xf32>
    %47 = vector.shape_cast %46 : vector<1x1xf32> to vector<1x1x1xf32>
    %48 = arith.addf %44, %47 : vector<1x1x1xf32>
    %c0_28 = arith.constant 0 : index
    %c0_29 = arith.constant 0 : index
    %c0_30 = arith.constant 0 : index
    %49 = vector.load %arg7[%c0_28, %c0_29, %c0_30] : memref<1x1x1xf32, #tpu.memory_space<vmem>>, vector<1x1x1xf32>
    tpu.vector_store %arg7[%c0_28, %c0_29, %c0_30], %48 {strides = array<i32>} : memref<1x1x1xf32, #tpu.memory_space<vmem>>, vector<1x1x1xf32>,
    return
  }
  func.func @transform_0(%arg0: i32, %arg1: i32) -> (i32, i32) {
    %c1_i32 = arith.constant 1 : i32
    %0 = arith.muli %arg0, %c1_i32 : i32
    %1 = arith.addi %0, %arg1 : i32
    %c0_i32 = arith.constant 0 : i32
    %c0_i32_0 = arith.constant 0 : i32
    return %1, %c0_i32 : i32, i32
  }
  func.func @transform_1(%arg0: i32, %arg1: i32) -> (i32, i32) {
    %c0_i32 = arith.constant 0 : i32
    %c0_i32_0 = arith.constant 0 : i32
    %c0_i32_1 = arith.constant 0 : i32
    return %c0_i32, %c0_i32_0 : i32, i32
  }
  func.func @transform_2(%arg0: i32, %arg1: i32) -> (i32, i32) {
    %c1_i32 = arith.constant 1 : i32
    %0 = arith.muli %arg0, %c1_i32 : i32
    %1 = arith.addi %0, %arg1 : i32
    %c0_i32 = arith.constant 0 : i32
    %c0_i32_0 = arith.constant 0 : i32
    return %1, %c0_i32 : i32, i32
  }
  func.func @transform_3(%arg0: i32, %arg1: i32) -> (i32, i32, i32) {
    %c1_i32 = arith.constant 1 : i32
    %0 = arith.muli %arg0, %c1_i32 : i32
    %1 = arith.addi %0, %arg1 : i32
    %c0_i32 = arith.constant 0 : i32
    %c0_i32_0 = arith.constant 0 : i32
    %c0_i32_1 = arith.constant 0 : i32
    return %1, %c0_i32, %c0_i32_0 : i32, i32, i32
  }
  func.func @transform_4(%arg0: i32, %arg1: i32) -> (i32, i32, i32) {
    %c0_i32 = arith.constant 0 : i32
    %c0_i32_0 = arith.constant 0 : i32
    %c0_i32_1 = arith.constant 0 : i32
    return %arg0, %c0_i32, %c0_i32_0 : i32, i32, i32
  }
  func.func @transform_5(%arg0: i32, %arg1: i32) -> (i32, i32, i32) {
    %c0_i32 = arith.constant 0 : i32
    %c0_i32_0 = arith.constant 0 : i32
    %c0_i32_1 = arith.constant 0 : i32
    return %arg0, %c0_i32, %c0_i32_0 : i32, i32, i32
  }
  func.func @transform_6(%arg0: i32, %arg1: i32) -> (i32, i32, i32) {
    %c0_i32 = arith.constant 0 : i32
    %c0_i32_0 = arith.constant 0 : i32
    %c0_i32_1 = arith.constant 0 : i32
    return %arg0, %c0_i32, %c0_i32_0 : i32, i32, i32
  }
  func.func @transform_7(%arg0: i32, %arg1: i32) -> (i32, i32, i32) {
    %c0_i32 = arith.constant 0 : i32
    %c0_i32_0 = arith.constant 0 : i32
    %c0_i32_1 = arith.constant 0 : i32
    return %arg0, %c0_i32, %c0_i32_0 : i32, i32, i32
  }
}

</mosaic_0001>

<llo_original>
// kernel: _lambda_.1
$region0: #{_lambda_.1}
  #allocation0 [shape = 'u32[]', space=smem, size = 0x4, offset = 0x4, fixed_abs, tag = 'smem constant byte address 0x4 - core index']
  #allocation1 [shape = 'u32[144,128]{1,0:T(1,128)}', space=vmem, size = 0x12000, scoped, tag = 'internal scratch']
  %s0 = inlined_call_operand.vmem [shape: f32[16,16], index: 0, kind: input, shape index: {}]
  %s1 = inlined_call_operand.vmem [shape: f32[128,16], index: 1, kind: input, shape index: {}]
  %s2 = inlined_call_operand.vmem [shape: f32[16,16], index: 2, kind: output, shape index: {0}]
  %s3 = inlined_call_operand.vmem [shape: s32[1,1,16], index: 3, kind: output, shape index: {1}]
  %s4 = inlined_call_operand.vmem [shape: f32[1,1,128], index: 4, kind: output, shape index: {2}]
  %s5 = inlined_call_operand.hbm [shape: f32[1,1,1], index: 5, kind: output, shape index: {3}]
  %s6 = inlined_call_operand.hbm [shape: f32[1,1,1], index: 6, kind: output, shape index: {4}]
  %s7 = inlined_call_operand.hbm [shape: f32[1,1,1], index: 7, kind: output, shape index: {5}]
  %8 = xla_tuple %s2, %s3, %s4, %s5, %s6, %s7
  %s9 = sld [smem:[#allocation0]]
  $region62: #{_lambda_.1} parent=0
    _
  %s11 = ssub.s32 1, %s9
  %s12 = scalar_select 0, %s11, %s9
  $region1: #{_lambda_.1} parent=0
    #allocation2 [shape = 'u8[512]{0}', space=vmem, size = 0x400, scoped, tag = 'output window, operand 3, single buffered']
    #allocation3 [shape = 's32[1]{0}', space=sflag, size = 0x4, scoped, tag = 'scoped memory for _lambda_.1']
    #allocation4 [shape = 'u8[512]{0}', space=vmem, size = 0x400, scoped, tag = 'output window, operand 4, single buffered']
    #allocation5 [shape = 's32[1]{0}', space=sflag, size = 0x4, scoped, tag = 'scoped memory for _lambda_.1']
    #allocation6 [shape = 'u8[512]{0}', space=vmem, size = 0x400, scoped, tag = 'output window, operand 5, single buffered']
    %13 = vsyncpa [#allocation3], 0
    %14 = vsyncpa [#allocation5], 0
    // Predicated region
    $region2: #{_lambda_.1} parent=1 // pred_check
      _
    $region3: #{_lambda_.1} parent=1 // pred_check_branch
      %16 = sbr.rel (0) target = $region5
    $region4: #{_lambda_.1} parent=1 // pred_region
      %s17 = sadd.s32 0, 0
      %s18 = smul.u32 2, %s17
      %p19 = scmp.lt.s32.totalorder %s18, 1
      %s20 = scalar_select %p19, %s18, 1
      %s21 = smul.addr %s20, 8
      %s22 = scalar_lea.vmem %s0, %s21
      %s23 = sadd.s32 0, 0
      %s24 = smul.u32 2, %s23
    $region5: #{_lambda_.1} parent=1 // pred_fallthru
      _
    // Predicated region
    $region6: #{_lambda_.1} parent=1 // pred_check
      _
    $region7: #{_lambda_.1} parent=1 // pred_check_branch
      %26 = sbr.rel (0) target = $region9
    $region8: #{_lambda_.1} parent=1 // pred_region
      _
    $region9: #{_lambda_.1} parent=1 // pred_fallthru
      _
    %s27 = sadd.s32 0, 0
    %s28 = smul.u32 2, %s27
    %p29 = scmp.lt.s32.totalorder %s28, 1
    %s30 = scalar_select %p29, %s28, 1
    %s31 = smul.addr %s30, 8
    %s32 = scalar_lea.vmem %s0, %s31
    %s33 = sadd.s32 0, 0
    %s34 = smul.u32 2, %s33
    %p35 = scmp.lt.s32.totalorder %s34, 1
    %s36 = scalar_select %p35, %s34, 1
    %s37 = smul.addr %s36, 8
    %s38 = scalar_lea.vmem %s2, %s37
    %s39 = sadd.s32 0, 0
    %p40 = scmp.lt.s32.totalorder %s39, 0
    %s41 = scalar_select %p40, %s39, 0
    %s42 = scalar_lea.vmem %s3, %s41
    %s43 = sadd.s32 0, 0
    %s44 = smul.u32 2, %s43
    %p45 = scmp.lt.s32.totalorder %s44, 1
    %s46 = scalar_select %p45, %s44, 1
    %s47 = smul.addr %s46, 8
    %s48 = scalar_lea.vmem %s0, %s47
    %s49 = sadd.s32 0, 0
    %s50 = smul.u32 2, %s49
    %s51 = sadd.s32 0, 0
    %s52 = smul.u32 2, %s51
    %p53 = scmp.lt.s32.totalorder %s52, 1
    %s54 = scalar_select %p53, %s52, 1
    %s55 = smul.addr %s54, 8
    %s56 = scalar_lea.vmem %s2, %s55
    %s57 = sadd.s32 0, 0
    %s58 = smul.u32 2, %s57
    %s59 = sadd.s32 0, 0
    %p60 = scmp.lt.s32.totalorder %s59, 0
    %s61 = scalar_select %p60, %s59, 0
    %s62 = scalar_lea.vmem %s3, %s61
    %s63 = sadd.s32 0, 0
    %v64 = vld [vmem:[%s1] sm:$0xff]
    %v65 = vld [vmem:[%s1 + $0x8] sm:$0xff]
    %v66 = vld [vmem:[%s1 + $0x10] sm:$0xff]
    %v67 = vld [vmem:[%s1 + $0x18] sm:$0xff]
    %v68 = vld [vmem:[%s1 + $0x20] sm:$0xff]
    %v69 = vld [vmem:[%s1 + $0x28] sm:$0xff]
    %v70 = vld [vmem:[%s1 + $0x30] sm:$0xff]
    %v71 = vld [vmem:[%s1 + $0x38] sm:$0xff]
    %v72 = vld [vmem:[%s1 + $0x40] sm:$0xff]
    %v73 = vld [vmem:[%s1 + $0x48] sm:$0xff]
    %v74 = vld [vmem:[%s1 + $0x50] sm:$0xff]
    %v75 = vld [vmem:[%s1 + $0x58] sm:$0xff]
    %v76 = vld [vmem:[%s1 + $0x60] sm:$0xff]
    %v77 = vld [vmem:[%s1 + $0x68] sm:$0xff]
    %v78 = vld [vmem:[%s1 + $0x70] sm:$0xff]
    %v79 = vld [vmem:[%s1 + $0x78] sm:$0xff]
    %v80 = vmul.f32 %v64, %v64
    %v81 = vmul.f32 %v65, %v65
    %v82 = vmul.f32 %v66, %v66
    %v83 = vmul.f32 %v67, %v67
    %v84 = vmul.f32 %v68, %v68
    %v85 = vmul.f32 %v69, %v69
    %v86 = vmul.f32 %v70, %v70
    %v87 = vmul.f32 %v71, %v71
    %v88 = vmul.f32 %v72, %v72
    %v89 = vmul.f32 %v73, %v73
    %v90 = vmul.f32 %v74, %v74
    %v91 = vmul.f32 %v75, %v75
    %v92 = vmul.f32 %v76, %v76
    %v93 = vmul.f32 %v77, %v77
    %v94 = vmul.f32 %v78, %v78
    %v95 = vmul.f32 %v79, %v79
    %vm96 = vcmask 130048
    %v98 = vsel %vm96, 1.0, 0
    %v101 = vsel %vm96, %v80, 0
    %v104 = vsel %vm96, %v81, 0
    %v107 = vsel %vm96, %v82, 0
    %v110 = vsel %vm96, %v83, 0
    %v113 = vsel %vm96, %v84, 0
    %v116 = vsel %vm96, %v85, 0
    %v119 = vsel %vm96, %v86, 0
    %v122 = vsel %vm96, %v87, 0
    %v125 = vsel %vm96, %v88, 0
    %v128 = vsel %vm96, %v89, 0
    %v131 = vsel %vm96, %v90, 0
    %v134 = vsel %vm96, %v91, 0
    %v137 = vsel %vm96, %v92, 0
    %v140 = vsel %vm96, %v93, 0
    %v143 = vsel %vm96, %v94, 0
    %v146 = vsel %vm96, %v95, 0
    %148 = vmatprep.subr.mxu0 0.0
    %149 = vmatpush1.xpose.msra.mxu0 %v101
    %150 = vmatprep.subr.mxu0 0.0
    %151 = vmatpush1.xpose.msra.mxu0 %v104
    %152 = vmatprep.subr.mxu0 0.0
    %153 = vmatpush1.xpose.msra.mxu0 %v107
    %154 = vmatprep.subr.mxu0 0.0
    %155 = vmatpush1.xpose.msra.mxu0 %v110
    %156 = vmatprep.subr.mxu0 0.0
    %157 = vmatpush1.xpose.msra.mxu0 %v113
    %158 = vmatprep.subr.mxu0 0.0
    %159 = vmatpush1.xpose.msra.mxu0 %v116
    %160 = vmatprep.subr.mxu0 0.0
    %161 = vmatpush1.xpose.msra.mxu0 %v119
    %162 = vmatprep.subr.mxu0 0.0
    %163 = vmatpush1.xpose.msra.mxu0 %v122
    %164 = vmatprep.subr.mxu0 0.0
    %165 = vmatpush1.xpose.msra.mxu0 %v125
    %166 = vmatprep.subr.mxu0 0.0
    %167 = vmatpush1.xpose.msra.mxu0 %v128
    %168 = vmatprep.subr.mxu0 0.0
    %169 = vmatpush1.xpose.msra.mxu0 %v131
    %170 = vmatprep.subr.mxu0 0.0
    %171 = vmatpush1.xpose.msra.mxu0 %v134
    %172 = vmatprep.subr.mxu0 0.0
    %173 = vmatpush1.xpose.msra.mxu0 %v137
    %174 = vmatprep.subr.mxu0 0.0
    %175 = vmatpush1.xpose.msra.mxu0 %v140
    %176 = vmatprep.subr.mxu0 0.0
    %177 = vmatpush1.xpose.msra.mxu0 %v143
    %178 = vmatprep.subr.mxu0 0.0
    %179 = vmatpush1.xpose.msra.mxu0 %v146
    %180 = vmatprep.subr.mxu0 0.0
    %181 = vmatpush1.xpose.msra.mxu0 0.0
    %182 = vmatprep.subr.mxu0 0.0
    %183 = vmatpush1.xpose.msra.mxu0 0.0
    %184 = vmatprep.subr.mxu0 0.0
    %185 = vmatpush1.xpose.msra.mxu0 0.0
    %186 = vmatprep.subr.mxu0 0.0
    %187 = vmatpush1.xpose.msra.mxu0 0.0
    %188 = vmatprep.subr.mxu0 0.0
    %189 = vmatpush1.xpose.msra.mxu0 0.0
    %190 = vmatprep.subr.mxu0 0.0
    %191 = vmatpush1.xpose.msra.mxu0 0.0
    %192 = vmatprep.subr.mxu0 0.0
    %193 = vmatpush1.xpose.msra.mxu0 0.0
    %194 = vmatprep.subr.mxu0 0.0
    %195 = vmatpush1.xpose.msra.mxu0 0.0
    %196 = vmatprep.subr.mxu0 0.0
    %197 = vmatpush1.xpose.msra.mxu0 0.0
    %198 = vmatprep.subr.mxu0 0.0
    %199 = vmatpush1.xpose.msra.mxu0 0.0
    %200 = vmatprep.subr.mxu0 0.0
    %201 = vmatpush1.xpose.msra.mxu0 0.0
    %202 = vmatprep.subr.mxu0 0.0
    %203 = vmatpush1.xpose.msra.mxu0 0.0
    %204 = vmatprep.subr.mxu0 0.0
    %205 = vmatpush1.xpose.msra.mxu0 0.0
    %206 = vmatprep.subr.mxu0 0.0
    %207 = vmatpush1.xpose.msra.mxu0 0.0
    %208 = vmatprep.subr.mxu0 0.0
    %209 = vmatpush1.xpose.msra.mxu0 0.0
    %210 = vmatprep.subr.mxu0 0.0
    %211 = vmatpush1.xpose.msra.mxu0 0.0
    %212 = vmatprep.mubr.f32.mxu0 0.0
    %213 = vmatmul.mubr.f32.gmra.mrb[0].mxu0 %v98
    %v214 = vpop.f32.mrb[0].mxu0
    %v215 = vadd.f32 0.0, %v214
    %v216 = vpop.f32.mrb[0].mxu0
    %217 = vdwg.mxu0
    %p218 = scmp.eq.s32.totalorder 0, 0
    // Predicated region
    $region10: #{_lambda_.1} parent=1 // pred_check
      %p219 = pneg %p218
    $region11: #{_lambda_.1} parent=1 // pred_check_branch
      %221 = sbr.rel (%p219) target = $region13
    $region12: #{_lambda_.1} parent=1 // pred_region
      %222 = vst [vmem:[%s4] sm:$0x1] 0.0
      %vm223 = vcmask 0
      %224 = vst.msk [vmem:[#allocation2] sm:$0x1] %vm223, 0.0
      %v225 = vsel %vm96, %v80, 0.0
      %226 = vadd.xlane.f32.xlu0 %v225
      %v227 = vpop.xlane.xlu0 %226
      %v228 = vsel %vm96, %v81, 0.0
      %229 = vadd.xlane.f32.xlu0 %v228
      %v230 = vpop.xlane.xlu0 %229
      %v231 = vsel %vm96, %v82, 0.0
      %232 = vadd.xlane.f32.xlu0 %v231
      %v233 = vpop.xlane.xlu0 %232
      %v234 = vsel %vm96, %v83, 0.0
      %235 = vadd.xlane.f32.xlu0 %v234
      %v236 = vpop.xlane.xlu0 %235
      %v237 = vsel %vm96, %v84, 0.0
      %238 = vadd.xlane.f32.xlu0 %v237
      %v239 = vpop.xlane.xlu0 %238
      %v240 = vsel %vm96, %v85, 0.0
      %241 = vadd.xlane.f32.xlu0 %v240
      %v242 = vpop.xlane.xlu0 %241
      %v243 = vsel %vm96, %v86, 0.0
      %244 = vadd.xlane.f32.xlu0 %v243
      %v245 = vpop.xlane.xlu0 %244
      %v246 = vsel %vm96, %v87, 0.0
      %247 = vadd.xlane.f32.xlu0 %v246
      %v248 = vpop.xlane.xlu0 %247
      %v249 = vsel %vm96, %v88, 0.0
      %250 = vadd.xlane.f32.xlu0 %v249
      %v251 = vpop.xlane.xlu0 %250
      %v252 = vsel %vm96, %v89, 0.0
      %253 = vadd.xlane.f32.xlu0 %v252
      %v254 = vpop.xlane.xlu0 %253
      %v255 = vsel %vm96, %v90, 0.0
      %256 = vadd.xlane.f32.xlu0 %v255
      %v257 = vpop.xlane.xlu0 %256
      %v258 = vsel %vm96, %v91, 0.0
      %259 = vadd.xlane.f32.xlu0 %v258
      %v260 = vpop.xlane.xlu0 %259
      %v261 = vsel %vm96, %v92, 0.0
      %262 = vadd.xlane.f32.xlu0 %v261
      %v263 = vpop.xlane.xlu0 %262
      %v264 = vsel %vm96, %v93, 0.0
      %265 = vadd.xlane.f32.xlu0 %v264
      %v266 = vpop.xlane.xlu0 %265
      %v267 = vsel %vm96, %v94, 0.0
      %268 = vadd.xlane.f32.xlu0 %v267
      %v269 = vpop.xlane.xlu0 %268
      %v270 = vsel %vm96, %v95, 0.0
      %271 = vadd.xlane.f32.xlu0 %v270
      %v272 = vpop.xlane.xlu0 %271
      %v274 = vsel %vm96, %v64, 0
      %v277 = vsel %vm96, %v65, 0
      %v280 = vsel %vm96, %v66, 0
      %v283 = vsel %vm96, %v67, 0
      %v286 = vsel %vm96, %v68, 0
      %v289 = vsel %vm96, %v69, 0
      %v292 = vsel %vm96, %v70, 0
      %v295 = vsel %vm96, %v71, 0
      %v298 = vsel %vm96, %v72, 0
      %v301 = vsel %vm96, %v73, 0
      %v304 = vsel %vm96, %v74, 0
      %v307 = vsel %vm96, %v75, 0
      %v310 = vsel %vm96, %v76, 0
      %v313 = vsel %vm96, %v77, 0
      %v316 = vsel %vm96, %v78, 0
      %v319 = vsel %vm96, %v79, 0
      %321 = vmatprep.subr.mxu0 0.0
      %322 = vmatpush1.xpose.msra.mxu0 %v274
      %323 = vmatprep.subr.mxu0 0.0
      %324 = vmatpush1.xpose.msra.mxu0 %v277
      %325 = vmatprep.subr.mxu0 0.0
      %326 = vmatpush1.xpose.msra.mxu0 %v280
      %327 = vmatprep.subr.mxu0 0.0
      %328 = vmatpush1.xpose.msra.mxu0 %v283
      %329 = vmatprep.subr.mxu0 0.0
      %330 = vmatpush1.xpose.msra.mxu0 %v286
      %331 = vmatprep.subr.mxu0 0.0
      %332 = vmatpush1.xpose.msra.mxu0 %v289
      %333 = vmatprep.subr.mxu0 0.0
      %334 = vmatpush1.xpose.msra.mxu0 %v292
      %335 = vmatprep.subr.mxu0 0.0
      %336 = vmatpush1.xpose.msra.mxu0 %v295
      %337 = vmatprep.subr.mxu0 0.0
      %338 = vmatpush1.xpose.msra.mxu0 %v298
      %339 = vmatprep.subr.mxu0 0.0
      %340 = vmatpush1.xpose.msra.mxu0 %v301
      %341 = vmatprep.subr.mxu0 0.0
      %342 = vmatpush1.xpose.msra.mxu0 %v304
      %343 = vmatprep.subr.mxu0 0.0
      %344 = vmatpush1.xpose.msra.mxu0 %v307
      %345 = vmatprep.subr.mxu0 0.0
      %346 = vmatpush1.xpose.msra.mxu0 %v310
      %347 = vmatprep.subr.mxu0 0.0
      %348 = vmatpush1.xpose.msra.mxu0 %v313
      %349 = vmatprep.subr.mxu0 0.0
      %350 = vmatpush1.xpose.msra.mxu0 %v316
      %351 = vmatprep.subr.mxu0 0.0
      %352 = vmatpush1.xpose.msra.mxu0 %v319
      %353 = vmatprep.subr.mxu0 0.0
      %354 = vmatpush1.xpose.msra.mxu0 0.0
      %355 = vmatprep.subr.mxu0 0.0
      %356 = vmatpush1.xpose.msra.mxu0 0.0
      %357 = vmatprep.subr.mxu0 0.0
      %358 = vmatpush1.xpose.msra.mxu0 0.0
      %359 = vmatprep.subr.mxu0 0.0
      %360 = vmatpush1.xpose.msra.mxu0 0.0
      %361 = vmatprep.subr.mxu0 0.0
      %362 = vmatpush1.xpose.msra.mxu0 0.0
      %363 = vmatprep.subr.mxu0 0.0
      %364 = vmatpush1.xpose.msra.mxu0 0.0
      %365 = vmatprep.subr.mxu0 0.0
      %366 = vmatpush1.xpose.msra.mxu0 0.0
      %367 = vmatprep.subr.mxu0 0.0
      %368 = vmatpush1.xpose.msra.mxu0 0.0
      %369 = vmatprep.subr.mxu0 0.0
      %370 = vmatpush1.xpose.msra.mxu0 0.0
      %371 = vmatprep.subr.mxu0 0.0
      %372 = vmatpush1.xpose.msra.mxu0 0.0
      %373 = vmatprep.subr.mxu0 0.0
      %374 = vmatpush1.xpose.msra.mxu0 0.0
      %375 = vmatprep.subr.mxu0 0.0
      %376 = vmatpush1.xpose.msra.mxu0 0.0
      %377 = vmatprep.subr.mxu0 0.0
      %378 = vmatpush1.xpose.msra.mxu0 0.0
      %379 = vmatprep.subr.mxu0 0.0
      %380 = vmatpush1.xpose.msra.mxu0 0.0
      %381 = vmatprep.subr.mxu0 0.0
      %382 = vmatpush1.xpose.msra.mxu0 0.0
      %383 = vmatprep.subr.mxu0 0.0
      %384 = vmatpush1.xpose.msra.mxu0 0.0
      %385 = vmatprep.mubr.f32.mxu0 0.0
      %386 = vmatmul.mubr.f32.gmra.mrb[0].mxu0 %v274
      %v387 = vpop.f32.mrb[0].mxu0
      %v388 = vadd.f32 0.0, %v387
      %v389 = vpop.f32.mrb[0].mxu0
      %390 = vmatprep.mubr.f32.mxu0 0.0
      %391 = vmatmul.mubr.f32.gmra.mrb[0].mxu0 %v277
      %v392 = vpop.f32.mrb[0].mxu0
      %v393 = vadd.f32 0.0, %v392
      %v394 = vpop.f32.mrb[0].mxu0
      %395 = vmatprep.mubr.f32.mxu0 0.0
      %396 = vmatmul.mubr.f32.gmra.mrb[0].mxu0 %v280
      %v397 = vpop.f32.mrb[0].mxu0
      %v398 = vadd.f32 0.0, %v397
      %v399 = vpop.f32.mrb[0].mxu0
      %400 = vmatprep.mubr.f32.mxu0 0.0
      %401 = vmatmul.mubr.f32.gmra.mrb[0].mxu0 %v283
      %v402 = vpop.f32.mrb[0].mxu0
      %v403 = vadd.f32 0.0, %v402
      %v404 = vpop.f32.mrb[0].mxu0
      %405 = vmatprep.mubr.f32.mxu0 0.0
      %406 = vmatmul.mubr.f32.gmra.mrb[0].mxu0 %v286
      %v407 = vpop.f32.mrb[0].mxu0
      %v408 = vadd.f32 0.0, %v407
      %v409 = vpop.f32.mrb[0].mxu0
      %410 = vmatprep.mubr.f32.mxu0 0.0
      %411 = vmatmul.mubr.f32.gmra.mrb[0].mxu0 %v289
      %v412 = vpop.f32.mrb[0].mxu0
      %v413 = vadd.f32 0.0, %v412
      %v414 = vpop.f32.mrb[0].mxu0
      %415 = vmatprep.mubr.f32.mxu0 0.0
      %416 = vmatmul.mubr.f32.gmra.mrb[0].mxu0 %v292
      %v417 = vpop.f32.mrb[0].mxu0
      %v418 = vadd.f32 0.0, %v417
      %v419 = vpop.f32.mrb[0].mxu0
      %420 = vmatprep.mubr.f32.mxu0 0.0
      %421 = vmatmul.mubr.f32.gmra.mrb[0].mxu0 %v295
      %v422 = vpop.f32.mrb[0].mxu0
      %v423 = vadd.f32 0.0, %v422
      %v424 = vpop.f32.mrb[0].mxu0
      %425 = vmatprep.mubr.f32.mxu0 0.0
      %426 = vmatmul.mubr.f32.gmra.mrb[0].mxu0 %v298
      %v427 = vpop.f32.mrb[0].mxu0
      %v428 = vadd.f32 0.0, %v427
      %v429 = vpop.f32.mrb[0].mxu0
      %430 = vmatprep.mubr.f32.mxu0 0.0
      %431 = vmatmul.mubr.f32.gmra.mrb[0].mxu0 %v301
      %v432 = vpop.f32.mrb[0].mxu0
      %v433 = vadd.f32 0.0, %v432
      %v434 = vpop.f32.mrb[0].mxu0
      %435 = vmatprep.mubr.f32.mxu0 0.0
      %436 = vmatmul.mubr.f32.gmra.mrb[0].mxu0 %v304
      %v437 = vpop.f32.mrb[0].mxu0
      %v438 = vadd.f32 0.0, %v437
      %v439 = vpop.f32.mrb[0].mxu0
      %440 = vmatprep.mubr.f32.mxu0 0.0
      %441 = vmatmul.mubr.f32.gmra.mrb[0].mxu0 %v307
      %v442 = vpop.f32.mrb[0].mxu0
      %v443 = vadd.f32 0.0, %v442
      %v444 = vpop.f32.mrb[0].mxu0
      %445 = vmatprep.mubr.f32.mxu0 0.0
      %446 = vmatmul.mubr.f32.gmra.mrb[0].mxu0 %v310
      %v447 = vpop.f32.mrb[0].mxu0
      %v448 = vadd.f32 0.0, %v447
      %v449 = vpop.f32.mrb[0].mxu0
      %450 = vmatprep.mubr.f32.mxu0 0.0
      %451 = vmatmul.mubr.f32.gmra.mrb[0].mxu0 %v313
      %v452 = vpop.f32.mrb[0].mxu0
      %v453 = vadd.f32 0.0, %v452
      %v454 = vpop.f32.mrb[0].mxu0
      %455 = vmatprep.mubr.f32.mxu0 0.0
      %456 = vmatmul.mubr.f32.gmra.mrb[0].mxu0 %v316
      %v457 = vpop.f32.mrb[0].mxu0
      %v458 = vadd.f32 0.0, %v457
      %v459 = vpop.f32.mrb[0].mxu0
      %460 = vmatprep.mubr.f32.mxu0 0.0
      %461 = vmatmul.mubr.f32.gmra.mrb[0].mxu0 %v319
      %v462 = vpop.f32.mrb[0].mxu0
      %v463 = vadd.f32 0.0, %v462
      %v464 = vpop.f32.mrb[0].mxu0
      %465 = vdwg.mxu0
      %v466 = vlaneseq
      %v467 = vshrl.u32 %v466, 7
      %v468 = vsub.s32 0, %v467
      %v469 = vrot.slane %v215, %v468
      %v470 = vadd.f32 %v227, %v469
      %v471 = vadd.f32 %v230, %v469
      %v472 = vadd.f32 %v233, %v469
      %v473 = vadd.f32 %v236, %v469
      %v474 = vadd.f32 %v239, %v469
      %v475 = vadd.f32 %v242, %v469
      %v476 = vadd.f32 %v245, %v469
      %v477 = vadd.f32 %v248, %v469
      %v478 = vadd.f32 %v251, %v469
      %v479 = vadd.f32 %v254, %v469
      %v480 = vadd.f32 %v257, %v469
      %v481 = vadd.f32 %v260, %v469
      %v482 = vadd.f32 %v263, %v469
      %v483 = vadd.f32 %v266, %v469
      %v484 = vadd.f32 %v269, %v469
      %v485 = vadd.f32 %v272, %v469
      %v486 = vmul.f32 %v388, 2.0
      %v487 = vmul.f32 %v393, 2.0
      %v488 = vmul.f32 %v398, 2.0
      %v489 = vmul.f32 %v403, 2.0
      %v490 = vmul.f32 %v408, 2.0
      %v491 = vmul.f32 %v413, 2.0
      %v492 = vmul.f32 %v418, 2.0
      %v493 = vmul.f32 %v423, 2.0
      %v494 = vmul.f32 %v428, 2.0
      %v495 = vmul.f32 %v433, 2.0
      %v496 = vmul.f32 %v438, 2.0
      %v497 = vmul.f32 %v443, 2.0
      %v498 = vmul.f32 %v448, 2.0
      %v499 = vmul.f32 %v453, 2.0
      %v500 = vmul.f32 %v458, 2.0
      %v501 = vmul.f32 %v463, 2.0
      %v502 = vsub.f32 %v470, %v486
      %v503 = vsub.f32 %v471, %v487
      %v504 = vsub.f32 %v472, %v488
      %v505 = vsub.f32 %v473, %v489
      %v506 = vsub.f32 %v474, %v490
      %v507 = vsub.f32 %v475, %v491
      %v508 = vsub.f32 %v476, %v492
      %v509 = vsub.f32 %v477, %v493
      %v510 = vsub.f32 %v478, %v494
      %v511 = vsub.f32 %v479, %v495
      %v512 = vsub.f32 %v480, %v496
      %v513 = vsub.f32 %v481, %v497
      %v514 = vsub.f32 %v482, %v498
      %v515 = vsub.f32 %v483, %v499
      %v516 = vsub.f32 %v484, %v500
      %v517 = vsub.f32 %v485, %v501
      %v518 = vmin.f32 %v502, %v506
      %v519 = vmin.f32 %v503, %v507
      %v520 = vmin.f32 %v504, %v508
      %v521 = vmin.f32 %v505, %v509
      %v522 = vmin.f32 %v518, %v510
      %v523 = vmin.f32 %v519, %v511
      %v524 = vmin.f32 %v520, %v512
      %v525 = vmin.f32 %v521, %v513
      %v526 = vmin.f32 %v522, %v514
      %v527 = vmin.f32 %v523, %v515
      %v528 = vmin.f32 %v524, %v516
      %v529 = vmin.f32 %v525, %v517
      %v530 = vmin.f32 %v526, %v527
      %v531 = vmin.f32 %v528, %v529
      %v532 = vmin.f32 %v530, %v531
      %v533 = vrot.slane %v532, 4
      %v534 = vmin.f32 %v532, %v533
      %v535 = vrot.slane %v534, 2
      %v536 = vmin.f32 %v534, %v535
      %v537 = vrot.slane %v536, 1
      %v538 = vmin.f32 %v536, %v537
      %v539 = vlaneseq
      %v540 = vshrl.u32 %v539, 7
      %v541 = vadd.s32 %v540, 8
      %v542 = vadd.s32 %v540, 16
      %v543 = vadd.s32 %v540, 24
      %v544 = vadd.s32 %v540, 32
      %v545 = vadd.s32 %v540, 40
      %v546 = vadd.s32 %v540, 48
      %v547 = vadd.s32 %v540, 56
      %v548 = vadd.s32 %v540, 64
      %v549 = vadd.s32 %v540, 72
      %v550 = vadd.s32 %v540, 80
      %v551 = vadd.s32 %v540, 88
      %v552 = vadd.s32 %v540, 96
      %v553 = vadd.s32 %v540, 104
      %v554 = vadd.s32 %v540, 112
      %v555 = vadd.s32 %v540, 120
      %vm556 = vcmp.eq.f32.partialorder %v502, %v538
      %vm557 = vcmp.eq.f32.partialorder %v503, %v538
      %vm558 = vcmp.eq.f32.partialorder %v504, %v538
      %vm559 = vcmp.eq.f32.partialorder %v505, %v538
      %vm560 = vcmp.eq.f32.partialorder %v506, %v538
      %vm561 = vcmp.eq.f32.partialorder %v507, %v538
      %vm562 = vcmp.eq.f32.partialorder %v508, %v538
      %vm563 = vcmp.eq.f32.partialorder %v509, %v538
      %vm564 = vcmp.eq.f32.partialorder %v510, %v538
      %vm565 = vcmp.eq.f32.partialorder %v511, %v538
      %vm566 = vcmp.eq.f32.partialorder %v512, %v538
      %vm567 = vcmp.eq.f32.partialorder %v513, %v538
      %vm568 = vcmp.eq.f32.partialorder %v514, %v538
      %vm569 = vcmp.eq.f32.partialorder %v515, %v538
      %vm570 = vcmp.eq.f32.partialorder %v516, %v538
      %vm571 = vcmp.eq.f32.partialorder %v517, %v538
      %v572 = vsel %vm556, %v540, 128
      %v573 = vsel %vm557, %v541, 128
      %v574 = vsel %vm558, %v542, 128
      %v575 = vsel %vm559, %v543, 128
      %v576 = vsel %vm560, %v544, 128
      %v577 = vsel %vm561, %v545, 128
      %v578 = vsel %vm562, %v546, 128
      %v579 = vsel %vm563, %v547, 128
      %v580 = vsel %vm564, %v548, 128
      %v581 = vsel %vm565, %v549, 128
      %v582 = vsel %vm566, %v550, 128
      %v583 = vsel %vm567, %v551, 128
      %v584 = vsel %vm568, %v552, 128
      %v585 = vsel %vm569, %v553, 128
      %v586 = vsel %vm570, %v554, 128
      %v587 = vsel %vm571, %v555, 128
      %vm588 = vcmp.lt.s32.totalorder %v572, %v576
      %v589 = vsel %vm588, %v572, %v576
      %vm590 = vcmp.lt.s32.totalorder %v573, %v577
      %v591 = vsel %vm590, %v573, %v577
      %vm592 = vcmp.lt.s32.totalorder %v574, %v578
      %v593 = vsel %vm592, %v574, %v578
      %vm594 = vcmp.lt.s32.totalorder %v575, %v579
      %v595 = vsel %vm594, %v575, %v579
      %vm596 = vcmp.lt.s32.totalorder %v589, %v580
      %v597 = vsel %vm596, %v589, %v580
      %vm598 = vcmp.lt.s32.totalorder %v591, %v581
      %v599 = vsel %vm598, %v591, %v581
      %vm600 = vcmp.lt.s32.totalorder %v593, %v582
      %v601 = vsel %vm600, %v593, %v582
      %vm602 = vcmp.lt.s32.totalorder %v595, %v583
      %v603 = vsel %vm602, %v595, %v583
      %vm604 = vcmp.lt.s32.totalorder %v597, %v584
      %v605 = vsel %vm604, %v597, %v584
      %vm606 = vcmp.lt.s32.totalorder %v599, %v585
      %v607 = vsel %vm606, %v599, %v585
      %vm608 = vcmp.lt.s32.totalorder %v601, %v586
      %v609 = vsel %vm608, %v601, %v586
      %vm610 = vcmp.lt.s32.totalorder %v603, %v587
      %v611 = vsel %vm610, %v603, %v587
      %vm612 = vcmp.lt.s32.totalorder %v605, %v607
      %v613 = vsel %vm612, %v605, %v607
      %vm614 = vcmp.lt.s32.totalorder %v609, %v611
      %v615 = vsel %vm614, %v609, %v611
      %vm616 = vcmp.lt.s32.totalorder %v613, %v615
      %v617 = vsel %vm616, %v613, %v615
      %v618 = vrot.slane %v617, 4
      %vm619 = vcmp.lt.s32.totalorder %v617, %v618
      %v620 = vsel %vm619, %v617, %v618
      %v621 = vrot.slane %v620, 2
      %vm622 = vcmp.lt.s32.totalorder %v620, %v621
      %v623 = vsel %vm622, %v620, %v621
      %v624 = vrot.slane %v623, 1
      %vm625 = vcmp.lt.s32.totalorder %v623, %v624
      %v626 = vsel %vm625, %v623, %v624
      %vm627 = vcmp.eq.s32.totalorder %v540, %v626
      %vm628 = vcmp.eq.s32.totalorder %v541, %v626
      %vm629 = vcmp.eq.s32.totalorder %v542, %v626
      %vm630 = vcmp.eq.s32.totalorder %v543, %v626
      %vm631 = vcmp.eq.s32.totalorder %v544, %v626
      %vm632 = vcmp.eq.s32.totalorder %v545, %v626
      %vm633 = vcmp.eq.s32.totalorder %v546, %v626
      %vm634 = vcmp.eq.s32.totalorder %v547, %v626
      %vm635 = vcmp.eq.s32.totalorder %v548, %v626
      %vm636 = vcmp.eq.s32.totalorder %v549, %v626
      %vm637 = vcmp.eq.s32.totalorder %v550, %v626
      %vm638 = vcmp.eq.s32.totalorder %v551, %v626
      %vm639 = vcmp.eq.s32.totalorder %v552, %v626
      %vm640 = vcmp.eq.s32.totalorder %v553, %v626
      %vm641 = vcmp.eq.s32.totalorder %v554, %v626
      %vm642 = vcmp.eq.s32.totalorder %v555, %v626
      %v643 = vsel %vm627, 3e+38, %v502
      %v644 = vsel %vm628, 3e+38, %v503
      %v645 = vsel %vm629, 3e+38, %v504
      %v646 = vsel %vm630, 3e+38, %v505
      %v647 = vsel %vm631, 3e+38, %v506
      %v648 = vsel %vm632, 3e+38, %v507
      %v649 = vsel %vm633, 3e+38, %v508
      %v650 = vsel %vm634, 3e+38, %v509
      %v651 = vsel %vm635, 3e+38, %v510
      %v652 = vsel %vm636, 3e+38, %v511
      %v653 = vsel %vm637, 3e+38, %v512
      %v654 = vsel %vm638, 3e+38, %v513
      %v655 = vsel %vm639, 3e+38, %v514
      %v656 = vsel %vm640, 3e+38, %v515
      %v657 = vsel %vm641, 3e+38, %v516
      %v658 = vsel %vm642, 3e+38, %v517
      %v659 = vmin.f32 %v643, %v647
      %v660 = vmin.f32 %v644, %v648
      %v661 = vmin.f32 %v645, %v649
      %v662 = vmin.f32 %v646, %v650
      %v663 = vmin.f32 %v659, %v651
      %v664 = vmin.f32 %v660, %v652
      %v665 = vmin.f32 %v661, %v653
      %v666 = vmin.f32 %v662, %v654
      %v667 = vmin.f32 %v663, %v655
      %v668 = vmin.f32 %v664, %v656
      %v669 = vmin.f32 %v665, %v657
      %v670 = vmin.f32 %v666, %v658
      %v671 = vmin.f32 %v667, %v668
      %v672 = vmin.f32 %v669, %v670
      %v673 = vmin.f32 %v671, %v672
      %v674 = vrot.slane %v673, 4
      %v675 = vmin.f32 %v673, %v674
      %v676 = vrot.slane %v675, 2
      %v677 = vmin.f32 %v675, %v676
      %v678 = vrot.slane %v677, 1
      %v679 = vmin.f32 %v677, %v678
      %680 = vadd.xlane.f32.xlu0 %v679
      %v681 = vpop.xlane.xlu0 %680
      %v682 = vrcp.pop 128.0
      %v683 = vmul.f32 %v681, %v682
      %684 = vst.msk [vmem:[#allocation4] sm:$0x1] %vm223, %v683
      %685 = vadd.xlane.f32.xlu0 %v502
      %v686 = vpop.xlane.xlu0 %685
      %687 = vadd.xlane.f32.xlu0 %v503
      %v688 = vpop.xlane.xlu0 %687
      %689 = vadd.xlane.f32.xlu0 %v504
      %v690 = vpop.xlane.xlu0 %689
      %691 = vadd.xlane.f32.xlu0 %v505
      %v692 = vpop.xlane.xlu0 %691
      %693 = vadd.xlane.f32.xlu0 %v506
      %v694 = vpop.xlane.xlu0 %693
      %695 = vadd.xlane.f32.xlu0 %v507
      %v696 = vpop.xlane.xlu0 %695
      %697 = vadd.xlane.f32.xlu0 %v508
      %v698 = vpop.xlane.xlu0 %697
      %699 = vadd.xlane.f32.xlu0 %v509
      %v700 = vpop.xlane.xlu0 %699
      %701 = vadd.xlane.f32.xlu0 %v510
      %v702 = vpop.xlane.xlu0 %701
      %703 = vadd.xlane.f32.xlu0 %v511
      %v704 = vpop.xlane.xlu0 %703
      %705 = vadd.xlane.f32.xlu0 %v512
      %v706 = vpop.xlane.xlu0 %705
      %707 = vadd.xlane.f32.xlu0 %v513
      %v708 = vpop.xlane.xlu0 %707
      %709 = vadd.xlane.f32.xlu0 %v514
      %v710 = vpop.xlane.xlu0 %709
      %711 = vadd.xlane.f32.xlu0 %v515
      %v712 = vpop.xlane.xlu0 %711
      %713 = vadd.xlane.f32.xlu0 %v516
      %v714 = vpop.xlane.xlu0 %713
      %715 = vadd.xlane.f32.xlu0 %v517
      %v716 = vpop.xlane.xlu0 %715
      %v717 = vmul.f32 %v686, %v682
      %v718 = vmul.f32 %v688, %v682
      %v719 = vmul.f32 %v690, %v682
      %v720 = vmul.f32 %v692, %v682
      %v721 = vmul.f32 %v694, %v682
      %v722 = vmul.f32 %v696, %v682
      %v723 = vmul.f32 %v698, %v682
      %v724 = vmul.f32 %v700, %v682
      %v725 = vmul.f32 %v702, %v682
      %v726 = vmul.f32 %v704, %v682
      %v727 = vmul.f32 %v706, %v682
      %v728 = vmul.f32 %v708, %v682
      %v729 = vmul.f32 %v710, %v682
      %v730 = vmul.f32 %v712, %v682
      %v731 = vmul.f32 %v714, %v682
      %v732 = vmul.f32 %v716, %v682
      %v733 = vsub.f32 %v502, %v717
      %v734 = vsub.f32 %v503, %v718
      %v735 = vsub.f32 %v504, %v719
      %v736 = vsub.f32 %v505, %v720
      %v737 = vsub.f32 %v506, %v721
      %v738 = vsub.f32 %v507, %v722
      %v739 = vsub.f32 %v508, %v723
      %v740 = vsub.f32 %v509, %v724
      %v741 = vsub.f32 %v510, %v725
      %v742 = vsub.f32 %v511, %v726
      %v743 = vsub.f32 %v512, %v727
      %v744 = vsub.f32 %v513, %v728
      %v745 = vsub.f32 %v514, %v729
      %v746 = vsub.f32 %v515, %v730
      %v747 = vsub.f32 %v516, %v731
      %v748 = vsub.f32 %v517, %v732
      %v749 = vmul.f32 %v733, %v733
      %v750 = vmul.f32 %v734, %v734
      %v751 = vmul.f32 %v735, %v735
      %v752 = vmul.f32 %v736, %v736
      %v753 = vmul.f32 %v737, %v737
      %v754 = vmul.f32 %v738, %v738
      %v755 = vmul.f32 %v739, %v739
      %v756 = vmul.f32 %v740, %v740
      %v757 = vmul.f32 %v741, %v741
      %v758 = vmul.f32 %v742, %v742
      %v759 = vmul.f32 %v743, %v743
      %v760 = vmul.f32 %v744, %v744
      %v761 = vmul.f32 %v745, %v745
      %v762 = vmul.f32 %v746, %v746
      %v763 = vmul.f32 %v747, %v747
      %v764 = vmul.f32 %v748, %v748
      %765 = vadd.xlane.f32.xlu0 %v749
      %v766 = vpop.xlane.xlu0 %765
      %767 = vadd.xlane.f32.xlu0 %v750
      %v768 = vpop.xlane.xlu0 %767
      %769 = vadd.xlane.f32.xlu0 %v751
      %v770 = vpop.xlane.xlu0 %769
      %771 = vadd.xlane.f32.xlu0 %v752
      %v772 = vpop.xlane.xlu0 %771
      %773 = vadd.xlane.f32.xlu0 %v753
      %v774 = vpop.xlane.xlu0 %773
      %775 = vadd.xlane.f32.xlu0 %v754
      %v776 = vpop.xlane.xlu0 %775
      %777 = vadd.xlane.f32.xlu0 %v755
      %v778 = vpop.xlane.xlu0 %777
      %779 = vadd.xlane.f32.xlu0 %v756
      %v780 = vpop.xlane.xlu0 %779
      %781 = vadd.xlane.f32.xlu0 %v757
      %v782 = vpop.xlane.xlu0 %781
      %783 = vadd.xlane.f32.xlu0 %v758
      %v784 = vpop.xlane.xlu0 %783
      %785 = vadd.xlane.f32.xlu0 %v759
      %v786 = vpop.xlane.xlu0 %785
      %787 = vadd.xlane.f32.xlu0 %v760
      %v788 = vpop.xlane.xlu0 %787
      %789 = vadd.xlane.f32.xlu0 %v761
      %v790 = vpop.xlane.xlu0 %789
      %791 = vadd.xlane.f32.xlu0 %v762
      %v792 = vpop.xlane.xlu0 %791
      %793 = vadd.xlane.f32.xlu0 %v763
      %v794 = vpop.xlane.xlu0 %793
      %795 = vadd.xlane.f32.xlu0 %v764
      %v796 = vpop.xlane.xlu0 %795
      %v797 = vrcp.pop 127.0
      %v798 = vmul.f32 %v766, %v797
      %v799 = vmul.f32 %v768, %v797
      %v800 = vmul.f32 %v770, %v797
      %v801 = vmul.f32 %v772, %v797
      %v802 = vmul.f32 %v774, %v797
      %v803 = vmul.f32 %v776, %v797
      %v804 = vmul.f32 %v778, %v797
      %v805 = vmul.f32 %v780, %v797
      %v806 = vmul.f32 %v782, %v797
      %v807 = vmul.f32 %v784, %v797
      %v808 = vmul.f32 %v786, %v797
      %v809 = vmul.f32 %v788, %v797
      %v810 = vmul.f32 %v790, %v797
      %v811 = vmul.f32 %v792, %v797
      %v812 = vmul.f32 %v794, %v797
      %v813 = vmul.f32 %v796, %v797
      %v814 = vadd.f32 %v798, %v799
      %v815 = vadd.f32 %v814, %v800
      %v816 = vadd.f32 %v815, %v801
      %v817 = vadd.f32 %v816, %v802
      %v818 = vadd.f32 %v817, %v803
      %v819 = vadd.f32 %v818, %v804
      %v820 = vadd.f32 %v819, %v805
      %v821 = vadd.f32 %v820, %v806
      %v822 = vadd.f32 %v821, %v807
      %v823 = vadd.f32 %v822, %v808
      %v824 = vadd.f32 %v823, %v809
      %v825 = vadd.f32 %v824, %v810
      %v826 = vadd.f32 %v825, %v811
      %v827 = vadd.f32 %v826, %v812
      %v828 = vadd.f32 %v827, %v813
      %v829 = vrot.slane %v828, 4
      %v830 = vadd.f32 %v828, %v829
      %v831 = vrot.slane %v830, 2
      %v832 = vadd.f32 %v830, %v831
      %v833 = vrot.slane %v832, 1
      %v834 = vadd.f32 %v832, %v833
      %v835 = vmul.f32 %v834, %v682
      %836 = vst.msk [vmem:[#allocation6] sm:$0x1] %vm223, %v835
    $region13: #{_lambda_.1} parent=1 // pred_fallthru
      _
    %v837 = vld [vmem:[%s48] sm:$0xff]
    %v838 = vld [vmem:[%s48 + $0x8] sm:$0xff]
    %v840 = vsel %vm96, %v837, 0
    %v843 = vsel %vm96, %v838, 0
    %v846 = vsel %vm96, %v64, 0
    %v849 = vsel %vm96, %v65, 0
    %v852 = vsel %vm96, %v66, 0
    %v855 = vsel %vm96, %v67, 0
    %v858 = vsel %vm96, %v68, 0
    %v861 = vsel %vm96, %v69, 0
    %v864 = vsel %vm96, %v70, 0
    %v867 = vsel %vm96, %v71, 0
    %v870 = vsel %vm96, %v72, 0
    %v873 = vsel %vm96, %v73, 0
    %v876 = vsel %vm96, %v74, 0
    %v879 = vsel %vm96, %v75, 0
    %v882 = vsel %vm96, %v76, 0
    %v885 = vsel %vm96, %v77, 0
    %v888 = vsel %vm96, %v78, 0
    %v891 = vsel %vm96, %v79, 0
    %893 = vmatprep.subr.mxu0 0.0
    %894 = vmatpush1.xpose.msra.mxu0 %v846
    %895 = vmatprep.subr.mxu0 0.0
    %896 = vmatpush1.xpose.msra.mxu0 %v849
    %897 = vmatprep.subr.mxu0 0.0
    %898 = vmatpush1.xpose.msra.mxu0 %v852
    %899 = vmatprep.subr.mxu0 0.0
    %900 = vmatpush1.xpose.msra.mxu0 %v855
    %901 = vmatprep.subr.mxu0 0.0
    %902 = vmatpush1.xpose.msra.mxu0 %v858
    %903 = vmatprep.subr.mxu0 0.0
    %904 = vmatpush1.xpose.msra.mxu0 %v861
    %905 = vmatprep.subr.mxu0 0.0
    %906 = vmatpush1.xpose.msra.mxu0 %v864
    %907 = vmatprep.subr.mxu0 0.0
    %908 = vmatpush1.xpose.msra.mxu0 %v867
    %909 = vmatprep.subr.mxu0 0.0
    %910 = vmatpush1.xpose.msra.mxu0 %v870
    %911 = vmatprep.subr.mxu0 0.0
    %912 = vmatpush1.xpose.msra.mxu0 %v873
    %913 = vmatprep.subr.mxu0 0.0
    %914 = vmatpush1.xpose.msra.mxu0 %v876
    %915 = vmatprep.subr.mxu0 0.0
    %916 = vmatpush1.xpose.msra.mxu0 %v879
    %917 = vmatprep.subr.mxu0 0.0
    %918 = vmatpush1.xpose.msra.mxu0 %v882
    %919 = vmatprep.subr.mxu0 0.0
    %920 = vmatpush1.xpose.msra.mxu0 %v885
    %921 = vmatprep.subr.mxu0 0.0
    %922 = vmatpush1.xpose.msra.mxu0 %v888
    %923 = vmatprep.subr.mxu0 0.0
    %924 = vmatpush1.xpose.msra.mxu0 %v891
    %925 = vmatprep.subr.mxu0 0.0
    %926 = vmatpush1.xpose.msra.mxu0 0.0
    %927 = vmatprep.subr.mxu0 0.0
    %928 = vmatpush1.xpose.msra.mxu0 0.0
    %929 = vmatprep.subr.mxu0 0.0
    %930 = vmatpush1.xpose.msra.mxu0 0.0
    %931 = vmatprep.subr.mxu0 0.0
    %932 = vmatpush1.xpose.msra.mxu0 0.0
    %933 = vmatprep.subr.mxu0 0.0
    %934 = vmatpush1.xpose.msra.mxu0 0.0
    %935 = vmatprep.subr.mxu0 0.0
    %936 = vmatpush1.xpose.msra.mxu0 0.0
    %937 = vmatprep.subr.mxu0 0.0
    %938 = vmatpush1.xpose.msra.mxu0 0.0
    %939 = vmatprep.subr.mxu0 0.0
    %940 = vmatpush1.xpose.msra.mxu0 0.0
    %941 = vmatprep.subr.mxu0 0.0
    %942 = vmatpush1.xpose.msra.mxu0 0.0
    %943 = vmatprep.subr.mxu0 0.0
    %944 = vmatpush1.xpose.msra.mxu0 0.0
    %945 = vmatprep.subr.mxu0 0.0
    %946 = vmatpush1.xpose.msra.mxu0 0.0
    %947 = vmatprep.subr.mxu0 0.0
    %948 = vmatpush1.xpose.msra.mxu0 0.0
    %949 = vmatprep.subr.mxu0 0.0
    %950 = vmatpush1.xpose.msra.mxu0 0.0
    %951 = vmatprep.subr.mxu0 0.0
    %952 = vmatpush1.xpose.msra.mxu0 0.0
    %953 = vmatprep.subr.mxu0 0.0
    %954 = vmatpush1.xpose.msra.mxu0 0.0
    %955 = vmatprep.subr.mxu0 0.0
    %956 = vmatpush1.xpose.msra.mxu0 0.0
    %957 = vmatprep.mubr.f32.mxu0 0.0
    %958 = vmatmul.mubr.f32.gmra.mrb[0].mxu0 %v840
    %v959 = vpop.f32.mrb[0].mxu0
    %v960 = vadd.f32 0.0, %v959
    %v961 = vpop.f32.mrb[0].mxu0
    %962 = vmatprep.mubr.f32.mxu0 0.0
    %963 = vmatmul.mubr.f32.gmra.mrb[0].mxu0 %v843
    %v964 = vpop.f32.mrb[0].mxu0
    %v965 = vadd.f32 0.0, %v964
    %v966 = vpop.f32.mrb[0].mxu0
    %967 = vdwg.mxu0
    %v968 = vmul.f32 %v960, 2.0
    %v969 = vmul.f32 %v965, 2.0
    %v970 = vlaneseq
    %v971 = vshrl.u32 %v970, 7
    %v972 = vsub.s32 0, %v971
    %v973 = vrot.slane %v215, %v972
    %v974 = vsub.f32 %v973, %v968
    %v975 = vsub.f32 %v973, %v969
    %v976 = vlaneseq
    %v977 = vand.u32 %v976, 127
    %978 = vmin.xlane.f32.xlu0 %v974
    %v979 = vpop.xlane.xlu0 %978
    %980 = vmin.xlane.f32.xlu0 %v975
    %v981 = vpop.xlane.xlu0 %980
    %vm982 = vcmp.eq.f32.partialorder %v974, %v979
    %vm983 = vcmp.eq.f32.partialorder %v975, %v981
    %v984 = vsel %vm982, %v977, 128
    %v985 = vsel %vm983, %v977, 128
    %v986 = vand.u32 %v984, 65535
    %v987 = vshra.s32 %v984, 16
    %v988 = vcvt.s32.f32 %v986
    %v989 = vcvt.s32.f32 %v987
    %990 = vmin.xlane.f32.xlu0 %v989
    %v991 = vpop.xlane.xlu0 %990
    %vm992 = vcmp.eq.f32.partialorder %v989, %v991
    %v993 = vsel %vm992, %v988, inf
    %994 = vmin.xlane.f32.xlu0 %v993
    %v995 = vpop.xlane.xlu0 %994
    %v996 = vcvt.f32.s32 %v995
    %v997 = vcvt.f32.s32 %v991
    %v998 = vshll.u32 %v997, 16
    %v999 = vadd.s32 %v998, %v996
    %v1000 = vand.u32 %v985, 65535
    %v1001 = vshra.s32 %v985, 16
    %v1002 = vcvt.s32.f32 %v1000
    %v1003 = vcvt.s32.f32 %v1001
    %1004 = vmin.xlane.f32.xlu0 %v1003
    %v1005 = vpop.xlane.xlu0 %1004
    %vm1006 = vcmp.eq.f32.partialorder %v1003, %v1005
    %v1007 = vsel %vm1006, %v1002, inf
    %1008 = vmin.xlane.f32.xlu0 %v1007
    %v1009 = vpop.xlane.xlu0 %1008
    %v1010 = vcvt.f32.s32 %v1009
    %v1011 = vcvt.f32.s32 %v1005
    %v1012 = vshll.u32 %v1011, 16
    %v1013 = vadd.s32 %v1012, %v1010
    %vm1014 = vcmp.eq.s32.totalorder %v977, %v999
    %vm1015 = vcmp.eq.s32.totalorder %v977, %v1013
    %v1016 = vsel %vm1014, 1, 0
    %v1017 = vsel %vm1015, 1, 0
    %v1018 = vcvt.s32.f32 %v1016
    %v1019 = vcvt.s32.f32 %v1017
    %1020 = vmatprep.subr.mxu0 0.0
    %1021 = vmatpush1.msra.mxu0 %v64
    %1022 = vmatprep.subr.mxu0 0.0
    %1023 = vmatpush1.msra.mxu0 %v65
    %1024 = vmatprep.subr.mxu0 0.0
    %1025 = vmatpush1.msra.mxu0 %v66
    %1026 = vmatprep.subr.mxu0 0.0
    %1027 = vmatpush1.msra.mxu0 %v67
    %1028 = vmatprep.subr.mxu0 0.0
    %1029 = vmatpush1.msra.mxu0 %v68
    %1030 = vmatprep.subr.mxu0 0.0
    %1031 = vmatpush1.msra.mxu0 %v69
    %1032 = vmatprep.subr.mxu0 0.0
    %1033 = vmatpush1.msra.mxu0 %v70
    %1034 = vmatprep.subr.mxu0 0.0
    %1035 = vmatpush1.msra.mxu0 %v71
    %1036 = vmatprep.subr.mxu0 0.0
    %1037 = vmatpush1.msra.mxu0 %v72
    %1038 = vmatprep.subr.mxu0 0.0
    %1039 = vmatpush1.msra.mxu0 %v73
    %1040 = vmatprep.subr.mxu0 0.0
    %1041 = vmatpush1.msra.mxu0 %v74
    %1042 = vmatprep.subr.mxu0 0.0
    %1043 = vmatpush1.msra.mxu0 %v75
    %1044 = vmatprep.subr.mxu0 0.0
    %1045 = vmatpush1.msra.mxu0 %v76
    %1046 = vmatprep.subr.mxu0 0.0
    %1047 = vmatpush1.msra.mxu0 %v77
    %1048 = vmatprep.subr.mxu0 0.0
    %1049 = vmatpush1.msra.mxu0 %v78
    %1050 = vmatprep.subr.mxu0 0.0
    %1051 = vmatpush1.msra.mxu0 %v79
    %1052 = vmatprep.subr.mxu0 0.0
    %1053 = vmatpush1.msra.mxu0 0.0
    %1054 = vmatprep.subr.mxu0 0.0
    %1055 = vmatpush1.msra.mxu0 0.0
    %1056 = vmatprep.subr.mxu0 0.0
    %1057 = vmatpush1.msra.mxu0 0.0
    %1058 = vmatprep.subr.mxu0 0.0
    %1059 = vmatpush1.msra.mxu0 0.0
    %1060 = vmatprep.subr.mxu0 0.0
    %1061 = vmatpush1.msra.mxu0 0.0
    %1062 = vmatprep.subr.mxu0 0.0
    %1063 = vmatpush1.msra.mxu0 0.0
    %1064 = vmatprep.subr.mxu0 0.0
    %1065 = vmatpush1.msra.mxu0 0.0
    %1066 = vmatprep.subr.mxu0 0.0
    %1067 = vmatpush1.msra.mxu0 0.0
    %1068 = vmatprep.subr.mxu0 0.0
    %1069 = vmatpush1.msra.mxu0 0.0
    %1070 = vmatprep.subr.mxu0 0.0
    %1071 = vmatpush1.msra.mxu0 0.0
    %1072 = vmatprep.subr.mxu0 0.0
    %1073 = vmatpush1.msra.mxu0 0.0
    %1074 = vmatprep.subr.mxu0 0.0
    %1075 = vmatpush1.msra.mxu0 0.0
    %1076 = vmatprep.subr.mxu0 0.0
    %1077 = vmatpush1.msra.mxu0 0.0
    %1078 = vmatprep.subr.mxu0 0.0
    %1079 = vmatpush1.msra.mxu0 0.0
    %1080 = vmatprep.subr.mxu0 0.0
    %1081 = vmatpush1.msra.mxu0 0.0
    %1082 = vmatprep.subr.mxu0 0.0
    %1083 = vmatpush1.msra.mxu0 0.0
    %1084 = vmatprep.mubr.f32.mxu0 0.0
    %1085 = vmatmul.mubr.f32.gmra.mrb[0].mxu0 %v1018
    %v1086 = vpop.f32.mrb[0].mxu0
    %v1087 = vadd.f32 0.0, %v1086
    %v1088 = vpop.f32.mrb[0].mxu0
    %1089 = vmatprep.mubr.f32.mxu0 0.0
    %1090 = vmatmul.mubr.f32.gmra.mrb[0].mxu0 %v1019
    %v1091 = vpop.f32.mrb[0].mxu0
    %v1092 = vadd.f32 0.0, %v1091
    %v1093 = vpop.f32.mrb[0].mxu0
    %1094 = vdwg.mxu0
    %1095 = vst.msk [vmem:[%s56] sm:$0xff] %vm96, %v1087
    %1096 = vst.msk [vmem:[%s56 + $0x8] sm:$0xff] %vm96, %v1092
    %v1097 = vcvt.s32.f32 %v977
    %1098 = vmatprep.subr.mxu0 0.0
    %1099 = vmatpush1.xpose.msra.mxu0 %v1018
    %1100 = vmatprep.subr.mxu0 0.0
    %1101 = vmatpush1.xpose.msra.mxu0 %v1019
    %1102 = vmatprep.subr.mxu0 0.0
    %1103 = vmatpush1.xpose.msra.mxu0 0.0
    %1104 = vmatprep.subr.mxu0 0.0
    %1105 = vmatpush1.xpose.msra.mxu0 0.0
    %1106 = vmatprep.subr.mxu0 0.0
    %1107 = vmatpush1.xpose.msra.mxu0 0.0
    %1108 = vmatprep.subr.mxu0 0.0
    %1109 = vmatpush1.xpose.msra.mxu0 0.0
    %1110 = vmatprep.subr.mxu0 0.0
    %1111 = vmatpush1.xpose.msra.mxu0 0.0
    %1112 = vmatprep.subr.mxu0 0.0
    %1113 = vmatpush1.xpose.msra.mxu0 0.0
    %1114 = vmatprep.subr.mxu0 0.0
    %1115 = vmatpush1.xpose.msra.mxu0 0.0
    %1116 = vmatprep.subr.mxu0 0.0
    %1117 = vmatpush1.xpose.msra.mxu0 0.0
    %1118 = vmatprep.subr.mxu0 0.0
    %1119 = vmatpush1.xpose.msra.mxu0 0.0
    %1120 = vmatprep.subr.mxu0 0.0
    %1121 = vmatpush1.xpose.msra.mxu0 0.0
    %1122 = vmatprep.subr.mxu0 0.0
    %1123 = vmatpush1.xpose.msra.mxu0 0.0
    %1124 = vmatprep.subr.mxu0 0.0
    %1125 = vmatpush1.xpose.msra.mxu0 0.0
    %1126 = vmatprep.subr.mxu0 0.0
    %1127 = vmatpush1.xpose.msra.mxu0 0.0
    %1128 = vmatprep.subr.mxu0 0.0
    %1129 = vmatpush1.xpose.msra.mxu0 0.0
    %1130 = vmatprep.subr.mxu0 0.0
    %1131 = vmatpush1.xpose.msra.mxu0 0.0
    %1132 = vmatprep.subr.mxu0 0.0
    %1133 = vmatpush1.xpose.msra.mxu0 0.0
    %1134 = vmatprep.subr.mxu0 0.0
    %1135 = vmatpush1.xpose.msra.mxu0 0.0
    %1136 = vmatprep.subr.mxu0 0.0
    %1137 = vmatpush1.xpose.msra.mxu0 0.0
    %1138 = vmatprep.subr.mxu0 0.0
    %1139 = vmatpush1.xpose.msra.mxu0 0.0
    %1140 = vmatprep.subr.mxu0 0.0
    %1141 = vmatpush1.xpose.msra.mxu0 0.0
    %1142 = vmatprep.subr.mxu0 0.0
    %1143 = vmatpush1.xpose.msra.mxu0 0.0
    %1144 = vmatprep.subr.mxu0 0.0
    %1145 = vmatpush1.xpose.msra.mxu0 0.0
    %1146 = vmatprep.subr.mxu0 0.0
    %1147 = vmatpush1.xpose.msra.mxu0 0.0
    %1148 = vmatprep.subr.mxu0 0.0
    %1149 = vmatpush1.xpose.msra.mxu0 0.0
    %1150 = vmatprep.subr.mxu0 0.0
    %1151 = vmatpush1.xpose.msra.mxu0 0.0
    %1152 = vmatprep.subr.mxu0 0.0
    %1153 = vmatpush1.xpose.msra.mxu0 0.0
    %1154 = vmatprep.subr.mxu0 0.0
    %1155 = vmatpush1.xpose.msra.mxu0 0.0
    %1156 = vmatprep.subr.mxu0 0.0
    %1157 = vmatpush1.xpose.msra.mxu0 0.0
    %1158 = vmatprep.subr.mxu0 0.0
    %1159 = vmatpush1.xpose.msra.mxu0 0.0
    %1160 = vmatprep.subr.mxu0 0.0
    %1161 = vmatpush1.xpose.msra.mxu0 0.0
    %1162 = vmatprep.mubr.f32.mxu0 0.0
    %1163 = vmatmul.mubr.f32.gmra.mrb[0].mxu0 %v1097
    %v1164 = vpop.f32.mrb[0].mxu0
    %v1165 = vadd.f32 0.0, %v1164
    %v1166 = vpop.f32.mrb[0].mxu0
    %1167 = vdwg.mxu0
    %v1168 = vcvt.f32.s32.to.zero.pseudo %v1165
    %vm1169 = vcmask 122880
    %1170 = vst.msk [vmem:[%s62] sm:$0x1] %vm1169, %v1168
    %v1171 = vadd.f32 %v1018, %v1019
    %v1172 = vrot.slane %v1171, 4
    %v1173 = vadd.f32 %v1171, %v1172
    %v1174 = vrot.slane %v1173, 2
    %v1175 = vadd.f32 %v1173, %v1174
    %v1176 = vrot.slane %v1175, 1
    %v1177 = vadd.f32 %v1175, %v1176
    %v1178 = vld [vmem:[%s4] sm:$0x1]
    %v1179 = vadd.f32 %v1178, %v1177
    %1180 = vst [vmem:[%s4] sm:$0x1] %v1179
    %v1181 = vsub.f32 %v1087, %v837
    %v1182 = vsub.f32 %v1092, %v838
    %v1183 = vmul.f32 %v1181, %v1181
    %v1184 = vmul.f32 %v1182, %v1182
    %v1185 = vsel %vm96, %v1183, 0.0
    %1186 = vadd.xlane.f32.xlu0 %v1185
    %v1187 = vpop.xlane.xlu0 %1186
    %v1188 = vsel %vm96, %v1184, 0.0
    %1189 = vadd.xlane.f32.xlu0 %v1188
    %v1190 = vpop.xlane.xlu0 %1189
    %v1191 = vld [vmem:[#allocation2] sm:$0x1]
    %v1192 = vadd.f32 %v1187, %v1190
    %v1193 = vrot.slane %v1192, 4
    %v1194 = vadd.f32 %v1192, %v1193
    %v1195 = vrot.slane %v1194, 2
    %v1196 = vadd.f32 %v1194, %v1195
    %v1197 = vrot.slane %v1196, 1
    %v1198 = vadd.f32 %v1196, %v1197
    %v1199 = vadd.f32 %v1191, %v1198
    %vm1200 = vcmask 0
    %1201 = vst.msk [vmem:[#allocation2] sm:$0x1] %vm1200, %v1199
    %s1202 = sadd.s32 0, 0
    %s1203 = smul.u32 2, %s1202
    %p1204 = scmp.lt.s32.totalorder %s1203, 1
    %s1205 = scalar_select %p1204, %s1203, 1
    %s1206 = smul.addr %s1205, 8
    %s1207 = scalar_lea.vmem %s2, %s1206
    %s1208 = sadd.s32 0, 0
    %p1209 = scmp.lt.s32.totalorder %s1208, 0
    %s1210 = scalar_select %p1209, %s1208, 0
    %s1211 = scalar_lea.vmem %s3, %s1210
    // Predicated region
    $region14: #{_lambda_.1} parent=1 // pred_check
      _
    $region15: #{_lambda_.1} parent=1 // pred_check_branch
      %1213 = sbr.rel (0) target = $region17
    $region16: #{_lambda_.1} parent=1 // pred_region
      %s1214 = sadd.s32 0, 0
      %s1215 = smul.u32 2, %s1214
    $region17: #{_lambda_.1} parent=1 // pred_fallthru
      _
    // Predicated region
    $region18: #{_lambda_.1} parent=1 // pred_check
      _
    $region19: #{_lambda_.1} parent=1 // pred_check_branch
      %1217 = sbr.rel (0) target = $region21
    $region20: #{_lambda_.1} parent=1 // pred_region
      %s1218 = sadd.s32 0, 0
    $region21: #{_lambda_.1} parent=1 // pred_fallthru
      _
    // Predicated region
    $region22: #{_lambda_.1} parent=1 // pred_check
      _
    $region23: #{_lambda_.1} parent=1 // pred_check_branch
      %1220 = sbr.rel (0) target = $region25
    $region24: #{_lambda_.1} parent=1 // pred_region
      _
    $region25: #{_lambda_.1} parent=1 // pred_fallthru
      _
    // Predicated region
    $region26: #{_lambda_.1} parent=1 // pred_check
      _
    $region27: #{_lambda_.1} parent=1 // pred_check_branch
      %1222 = sbr.rel (0) target = $region29
    $region28: #{_lambda_.1} parent=1 // pred_region
      %s1224 = ssub.s32 16, 16
      %1225 = vsyncadd [#allocation3], %s1224
      %s1227 = sshll.u32 [#allocation2], 4
      %s1228 = int_to_ptr.vmem [resolvable:$true] %s1227
      %1230 = dma.vmem_to_hbm [thread:$0]  %s1228, 16, %s5, [#allocation3]
    $region29: #{_lambda_.1} parent=1 // pred_fallthru
      _
    // Predicated region
    $region30: #{_lambda_.1} parent=1 // pred_check
      _
    $region31: #{_lambda_.1} parent=1 // pred_check_branch
      %1232 = sbr.rel (0) target = $region33
    $region32: #{_lambda_.1} parent=1 // pred_region
      %s1234 = ssub.s32 16, 16
      %1235 = vsyncadd [#allocation5], %s1234
      %s1237 = sshll.u32 [#allocation4], 4
      %s1238 = int_to_ptr.vmem [resolvable:$true] %s1237
      %1240 = dma.vmem_to_hbm [thread:$0]  %s1238, 16, %s6, [#allocation5]
    $region33: #{_lambda_.1} parent=1 // pred_fallthru
      _
    // Predicated region
    $region34: #{_lambda_.1} parent=1 // pred_check
      _
    $region35: #{_lambda_.1} parent=1 // pred_check_branch
      %1242 = sbr.rel (0) target = $region37
    $region36: #{_lambda_.1} parent=1 // pred_region
      %s1244 = ssub.s32 16, 16
      %1245 = vsyncadd [#allocation5], %s1244
      %s1247 = sshll.u32 [#allocation6], 4
      %s1248 = int_to_ptr.vmem [resolvable:$true] %s1247
      %1250 = dma.vmem_to_hbm [thread:$0]  %s1248, 16, %s7, [#allocation5]
    $region37: #{_lambda_.1} parent=1 // pred_fallthru
      _
    // Predicated region
    $region38: #{_lambda_.1} parent=1 // pred_check
      _
    $region39: #{_lambda_.1} parent=1 // pred_check_branch
      %1252 = sbr.rel (0) target = $region41
    $region40: #{_lambda_.1} parent=1 // pred_region
      %s1253 = sadd.s32 0, 0
      %s1254 = smul.u32 2, %s1253
      %p1255 = scmp.lt.s32.totalorder %s1254, 1
      %s1256 = scalar_select %p1255, %s1254, 1
      %s1257 = smul.addr %s1256, 8
      %s1258 = scalar_lea.vmem %s2, %s1257
    $region41: #{_lambda_.1} parent=1 // pred_fallthru
      _
    // Predicated region
    $region42: #{_lambda_.1} parent=1 // pred_check
      _
    $region43: #{_lambda_.1} parent=1 // pred_check_branch
      %1260 = sbr.rel (0) target = $region45
    $region44: #{_lambda_.1} parent=1 // pred_region
      %s1261 = sadd.s32 0, 0
      %p1262 = scmp.lt.s32.totalorder %s1261, 0
      %s1263 = scalar_select %p1262, %s1261, 0
      %s1264 = scalar_lea.vmem %s3, %s1263
    $region45: #{_lambda_.1} parent=1 // pred_fallthru
      _
    // Predicated region
    $region46: #{_lambda_.1} parent=1 // pred_check
      _
    $region47: #{_lambda_.1} parent=1 // pred_check_branch
      %1266 = sbr.rel (0) target = $region49
    $region48: #{_lambda_.1} parent=1 // pred_region
      _
    $region49: #{_lambda_.1} parent=1 // pred_fallthru
      _
    // Predicated region
    $region50: #{_lambda_.1} parent=1 // pred_check
      _
    $region51: #{_lambda_.1} parent=1 // pred_check_branch
      %1268 = sbr.rel (0) target = $region53
    $region52: #{_lambda_.1} parent=1 // pred_region
      %1269 = dma.done [#allocation3], 16
    $region53: #{_lambda_.1} parent=1 // pred_fallthru
      _
    // Predicated region
    $region54: #{_lambda_.1} parent=1 // pred_check
      _
    $region55: #{_lambda_.1} parent=1 // pred_check_branch
      %1271 = sbr.rel (0) target = $region57
    $region56: #{_lambda_.1} parent=1 // pred_region
      %1272 = dma.done [#allocation5], 16
    $region57: #{_lambda_.1} parent=1 // pred_fallthru
      _
    // Predicated region
    $region58: #{_lambda_.1} parent=1 // pred_check
      _
    $region59: #{_lambda_.1} parent=1 // pred_check_branch
      %1274 = sbr.rel (0) target = $region61
    $region60: #{_lambda_.1} parent=1 // pred_region
      %1275 = dma.done [#allocation5], 16
    $region61: #{_lambda_.1} parent=1 // pred_fallthru
      _
    %1276 = vsyncpa [#allocation3], 1
    %1277 = vsyncpa [#allocation5], 1

</llo_original>
